<compile_context>
chip_gen: v6e
topology: v6e:2x2x1
jax: 0.10.0
libtpu: 0.0.40
codegen_flags: <defaults>
</compile_context>

<pallas_src>
import functools

import jax
import jax.numpy as jnp
import numpy as np
from jax.experimental import pallas as pl
from jax.experimental.pallas import tpu as pltpu


def _round_up(x, m):
    return (x + m - 1) // m * m


def _vmem_capacity_bytes():
    """Per-core VMEM capacity; conservative 64 MiB (v7x) fallback."""
    try:
        return int(pltpu.get_tpu_info().vmem_capacity_bytes)
    except Exception:
        return 64 * 1024 * 1024


def _step_vmem_bytes(NB, H, W, Cp, Pp, out_bytes):
    """Rough per-grid-step VMEM footprint: double-buffered I/O + weights +
    patches scratch + live f32 intermediates."""
    M = NB * H * W
    x_block = NB * H * W * Cp * 2 * 2            # bf16 input, 2x buffered
    o_block = NB * H * W * Cp * out_bytes * 2    # output, 2x buffered
    patches = NB * (H + 2) * W * 3 * Pp * 2      # bf16 scratch
    weights = (Cp * Pp + 3 * 3 * Pp * Pp + Pp * Cp) * 2 * 2
    biases = (2 * Pp + Cp) * 4 * 2
    inter = M * (4 * Pp + 3 * Cp) * 4            # out1/left/right/acc/out3/...
    return x_block + o_block + patches + weights + biases + inter


def _pick_batch_block(N, H, W, Cp, Pp, out_bytes, budget):
    """Largest divisor of N that fits the VMEM budget, capped at N//2 so the
    'parallel' grid keeps >= 2 steps (v7x megacore sharding)."""
    max_nb = max(1, N // 2)
    nb = 1
    for d in range(1, N + 1):
        if N % d != 0 or d > max_nb:
            continue
        if _step_vmem_bytes(d, H, W, Cp, Pp, out_bytes) <= budget:
            nb = d
    return nb


def _bottleneck_kernel(x_ref, w1_ref, w2_ref, w3_ref, b1_ref, b2_ref, b3_ref,
                       o_ref, patches_ref, *, NB, H, W, P, fuse_dx):
    """NB images per grid step. bf16 matmuls, f32 accumulation on the MXU.
    BN scales are pre-folded into the weights; only bias + ReLU here."""
    C = x_ref.shape[-1]                          # padded Cin == padded Cout
    M = NB * H * W
    bf16 = jnp.bfloat16

    x2d = x_ref[...].reshape(M, C)               # bf16 (M, C)

    # ---- conv1 (1x1, BN1 scale folded into w1) + bias + ReLU -------------
    out1 = jnp.dot(x2d, w1_ref[...], preferred_element_type=jnp.float32)
    out1 = jnp.maximum(out1 + b1_ref[...], 0.0)  # f32 (M, P)

    # ---- conv2 patch assembly (hoisted out of the dy loop) ---------------
    # Rolling the flat (M, P) activation by +1 / -1 rows shifts w by -1 / +1
    # within each image row; the wrapped entries land exactly on the w==0 /
    # w==W-1 columns, which the edge mask zeroes (== the conv's zero pad).
    col = jax.lax.broadcasted_iota(jnp.int32, (NB, H, W, P), 2)
    left = jnp.where(col == 0, 0.0,
                     pltpu.roll(out1, 1, axis=0).reshape(NB, H, W, P))
    right = jnp.where(col == W - 1, 0.0,
                      pltpu.roll(out1, M - 1, axis=0).reshape(NB, H, W, P))

    patches_ref[:, 1:H + 1, :, 0 * P:1 * P] = left.astype(bf16)
    patches_ref[:, 1:H + 1, :, 1 * P:2 * P] = out1.astype(bf16).reshape(NB, H, W, P)
    patches_ref[:, 1:H + 1, :, 2 * P:3 * P] = right.astype(bf16)
    # Zero only the two H-halo rows (tiny, aligned along the untiled H axis);
    # redone every step so each megacore's private scratch stays correct.
    zrow = jnp.zeros((NB, 1, W, 3 * P), bf16)
    patches_ref[:, 0:1, :, :] = zrow
    patches_ref[:, H + 1:H + 2, :, :] = zrow

    # ---- conv2 (3x3, BN2 scale folded into w2) + bias + ReLU -------------
    if fuse_dx:
        # One dot per dy with K = 3*P (good for the 256-deep MXUs: v6e/v7x).
        acc = jnp.dot(patches_ref[:, 0:H, :, :].reshape(M, 3 * P), w2_ref[0],
                      preferred_element_type=jnp.float32)
        for dy in (1, 2):
            acc = acc + jnp.dot(
                patches_ref[:, dy:dy + H, :, :].reshape(M, 3 * P), w2_ref[dy],
                preferred_element_type=jnp.float32)
    else:
        # 9 dots with K = P (v5e's 128-deep MXU gains nothing from K = 3*P).
        acc = None
        for dy in range(3):
            for dx in range(3):
                tap = patches_ref[:, dy:dy + H, :, dx * P:(dx + 1) * P]
                d = jnp.dot(tap.reshape(M, P),
                            w2_ref[dy, dx * P:(dx + 1) * P, :],
                            preferred_element_type=jnp.float32)
                acc = d if acc is None else acc + d
    out2 = jnp.maximum(acc + b2_ref[...], 0.0)   # f32 (M, P)

    # ---- conv3 (1x1, BN3 scale folded into w3) + bias + residual + ReLU --
    out3 = jnp.dot(out2.astype(bf16), w3_ref[...],
                   preferred_element_type=jnp.float32)
    out = jnp.maximum(out3 + b3_ref[...] + x2d.astype(jnp.float32), 0.0)
    o_ref[...] = out.reshape(NB, H, W, C).astype(o_ref.dtype)


def bottleneck_pallas(x_nchw, w1_oihw, w2_oihw, w3_oihw,
                      s1, b1, s2, b2, s3, b3,
                      *, out_dtype=jnp.float32, fuse_conv2_dx=True):
    """x_nchw: (N, Cin, H, W) f32. Torch-layout conv weights (O, I, kh, kw).
    s*/b*: folded eval-mode BN scale/bias vectors. Returns (N, Cout, H, W).

    out_dtype: use jnp.bfloat16 to halve the output VMEM block / HBM writeback
    when downstream consumes bf16. fuse_conv2_dx: set False on v5e (128-deep
    MXU) to use the 9-dot K=Pp form of conv2."""
    N, Cin, H, W = x_nchw.shape
    P = w1_oihw.shape[0]
    Cout = w3_oihw.shape[0]
    assert Cin == Cout, "identity bottleneck requires inplanes == planes*4"
    # TODO(synk): stride>1 / downsample branch not supported.

    LANE = 128
    Cp = _round_up(Cin, LANE)      # lane-dense residual / output channels
    Pp = _round_up(P, LANE)        # lane-dense bottleneck channels

    # NCHW -> NHWC, zero-pad channels, cast activations to bf16.
    x = jnp.transpose(x_nchw, (0, 2, 3, 1))
    x = jnp.pad(x, ((0, 0), (0, 0), (0, 0), (0, Cp - Cin))).astype(jnp.bfloat16)

    # BN eval-mode scales folded into the conv output channels (exact);
    # weights zero-padded to lane-dense shapes and cast to bf16.
    w1_f = jnp.transpose(w1_oihw[:, :, 0, 0], (1, 0)) * s1[None, :]
    w1 = (jnp.zeros((Cp, Pp), jnp.float32).at[:Cin, :P].set(w1_f)
          .astype(jnp.bfloat16))
    w2_hwio = jnp.transpose(w2_oihw, (2, 3, 1, 0)) * s2[None, None, None, :]
    w2 = (jnp.zeros((3, 3, Pp, Pp), jnp.float32).at[:, :, :P, :P].set(w2_hwio)
          .reshape(3, 3 * Pp, Pp).astype(jnp.bfloat16))   # (dy, dx*Pp + i, o)
    w3_f = jnp.transpose(w3_oihw[:, :, 0, 0], (1, 0)) * s3[None, :]
    w3 = (jnp.zeros((Pp, Cp), jnp.float32).at[:P, :Cout].set(w3_f)
          .astype(jnp.bfloat16))

    def pad_vec(v, n):
        return jnp.pad(v.astype(jnp.float32), (0, n - v.shape[0])).reshape(1, n)

    b1p, b2p, b3p = pad_vec(b1, Pp), pad_vec(b2, Pp), pad_vec(b3, Cp)

    # VMEM-budgeted batch folding + compiler VMEM limit (chip-aware).
    out_bytes = jnp.dtype(out_dtype).itemsize
    cap = _vmem_capacity_bytes()
    budget = int(cap * 0.55)
    NB = _pick_batch_block(N, H, W, Cp, Pp, out_bytes, budget)
    footprint = _step_vmem_bytes(NB, H, W, Cp, Pp, out_bytes)
    vmem_limit = int(min(int(cap * 0.9),
                         max(2 * footprint, 32 * 1024 * 1024)))

    kernel = functools.partial(_bottleneck_kernel, NB=NB, H=H, W=W, P=Pp,
                               fuse_dx=fuse_conv2_dx)

    out = pl.pallas_call(
        kernel,
        out_shape=jax.ShapeDtypeStruct((N, H, W, Cp), out_dtype),
        grid_spec=pltpu.PrefetchScalarGridSpec(
            num_scalar_prefetch=0,
            grid=(N // NB,),
            in_specs=[
                pl.BlockSpec((NB, H, W, Cp), lambda n: (n, 0, 0, 0)),   # x
                pl.BlockSpec((Cp, Pp), lambda n: (0, 0)),               # w1
                pl.BlockSpec((3, 3 * Pp, Pp), lambda n: (0, 0, 0)),     # w2
                pl.BlockSpec((Pp, Cp), lambda n: (0, 0)),               # w3
                pl.BlockSpec((1, Pp), lambda n: (0, 0)),                # bn1 bias
                pl.BlockSpec((1, Pp), lambda n: (0, 0)),                # bn2 bias
                pl.BlockSpec((1, Cp), lambda n: (0, 0)),                # bn3 bias
            ],
            out_specs=pl.BlockSpec((NB, H, W, Cp), lambda n: (n, 0, 0, 0)),
            scratch_shapes=[
                pltpu.VMEM((NB, H + 2, W, 3 * Pp), jnp.bfloat16)],
        ),
        compiler_params=pltpu.CompilerParams(
            dimension_semantics=("parallel",),
            vmem_limit_bytes=vmem_limit),
    )(x, w1, w2, w3, b1p, b2p, b3p)

    out = out[..., :Cout]                                    # drop pad lanes
    return jnp.transpose(out, (0, 3, 1, 2))                  # NHWC -> NCHW


# ---------------------------------------------------------------------------
# Pure-JAX f32 reference (eval-mode BN, same folded scale/bias).
# ---------------------------------------------------------------------------
def bottleneck_ref(x_nchw, w1_hwio, w2_hwio, w3_hwio, s1, b1, s2, b2, s3, b3):
    x = jnp.transpose(x_nchw, (0, 2, 3, 1))
    dn = ("NHWC", "HWIO", "NHWC")
    prec = jax.lax.Precision.HIGHEST

    out = jax.lax.conv_general_dilated(x, w1_hwio, (1, 1), "VALID",
                                       dimension_numbers=dn, precision=prec)
    out = jnp.maximum(out * s1 + b1, 0.0)
    out = jax.lax.conv_general_dilated(out, w2_hwio, (1, 1), ((1, 1), (1, 1)),
                                       dimension_numbers=dn, precision=prec)
    out = jnp.maximum(out * s2 + b2, 0.0)
    out = jax.lax.conv_general_dilated(out, w3_hwio, (1, 1), "VALID",
                                       dimension_numbers=dn, precision=prec)
    out = out * s3 + b3
    out = jnp.maximum(out + x, 0.0)
    return jnp.transpose(out, (0, 3, 1, 2))


def _fold_bn(gamma, beta, mean, var, eps=1e-5):
    scale = gamma / jnp.sqrt(var + eps)
    bias = beta - mean * scale
    return scale, bias


if __name__ == "__main__":
    # Bottleneck(inplanes=32, planes=8) -> expansion 4, Cout=32 (identity).
    N, P, H, W = 2, 8, 8, 8
    Cin = Cout = P * 4

    key = jax.random.PRNGKey(0)
    keys = jax.random.split(key, 8)

    x = jax.random.normal(keys[0], (N, Cin, H, W), jnp.float32)

    # Torch-shaped conv weights (out, in, kh, kw).
    w1_t = 0.1 * jax.random.normal(keys[1], (P, Cin, 1, 1), jnp.float32)
    w2_t = 0.1 * jax.random.normal(keys[2], (P, P, 3, 3), jnp.float32)
    w3_t = 0.1 * jax.random.normal(keys[3], (Cout, P, 1, 1), jnp.float32)

    def bn_params(k, c):
        k1, k2, k3, k4 = jax.random.split(k, 4)
        gamma = jax.random.uniform(k1, (c,), jnp.float32, 0.5, 1.5)
        beta = 0.1 * jax.random.normal(k2, (c,), jnp.float32)
        mean = 0.1 * jax.random.normal(k3, (c,), jnp.float32)
        var = jax.random.uniform(k4, (c,), jnp.float32, 0.5, 1.5)
        return gamma, beta, mean, var

    s1, b1 = _fold_bn(*bn_params(keys[4], P))
    s2, b2 = _fold_bn(*bn_params(keys[5], P))
    s3, b3 = _fold_bn(*bn_params(keys[6], Cout))

    out = bottleneck_pallas(x, w1_t, w2_t, w3_t, s1, b1, s2, b2, s3, b3)
    out = jax.block_until_ready(out)

    # HWIO weights for the f32 reference.
    w1_r = jnp.transpose(w1_t, (2, 3, 1, 0))
    w2_r = jnp.transpose(w2_t, (2, 3, 1, 0))
    w3_r = jnp.transpose(w3_t, (2, 3, 1, 0))
    ref = bottleneck_ref(x, w1_r, w2_r, w3_r, s1, b1, s2, b2, s3, b3)
    ref = jax.block_until_ready(ref)

    # Kernel runs bf16 matmuls (f32 accumulation); compare vs f32 reference
    # with bf16-appropriate tolerances.
    np.testing.assert_allclose(np.asarray(out), np.asarray(ref),
                               rtol=5e-2, atol=5e-2)
    print("KERNEL_OK")
</pallas_src>

<mosaic_0001>
module attributes {stable_mosaic.version = 11 : i64} {
  func.func @_bottleneck_kernel(%arg0: i32, %arg1: memref<1x8x8x128xbf16, #tpu.memory_space<vmem>>, %arg2: memref<128x128xbf16, #tpu.memory_space<vmem>>, %arg3: memref<3x384x128xbf16, #tpu.memory_space<vmem>>, %arg4: memref<128x128xbf16, #tpu.memory_space<vmem>>, %arg5: memref<1x128xf32, #tpu.memory_space<vmem>>, %arg6: memref<1x128xf32, #tpu.memory_space<vmem>>, %arg7: memref<1x128xf32, #tpu.memory_space<vmem>>, %arg8: memref<1x8x8x128xf32, #tpu.memory_space<vmem>>, %arg9: memref<1x10x8x384xbf16, #tpu.memory_space<vmem>>) attributes {dimension_semantics = [#tpu.dimension_semantics<parallel>], iteration_bounds = array<i64: 2>, scalar_prefetch = 0 : i64, scratch_operands = 1 : i64, tpu.core_type = #tpu.core_type<tc>, window_params = [{transform_indices = @transform_0, window_bounds = array<i64: 1, 8, 8, 128>}, {pipeline_mode = #tpu.pipeline_mode<synchronous>, transform_indices = @transform_1, window_bounds = array<i64: 128, 128>}, {pipeline_mode = #tpu.pipeline_mode<synchronous>, transform_indices = @transform_2, window_bounds = array<i64: 3, 384, 128>}, {pipeline_mode = #tpu.pipeline_mode<synchronous>, transform_indices = @transform_3, window_bounds = array<i64: 128, 128>}, {pipeline_mode = #tpu.pipeline_mode<synchronous>, transform_indices = @transform_4, window_bounds = array<i64: 1, 128>}, {pipeline_mode = #tpu.pipeline_mode<synchronous>, transform_indices = @transform_5, window_bounds = array<i64: 1, 128>}, {pipeline_mode = #tpu.pipeline_mode<synchronous>, transform_indices = @transform_6, window_bounds = array<i64: 1, 128>}, {transform_indices = @transform_7, window_bounds = array<i64: 1, 8, 8, 128>}]} {
    %c0 = arith.constant 0 : index
    %c0_0 = arith.constant 0 : index
    %c0_1 = arith.constant 0 : index
    %c0_2 = arith.constant 0 : index
    %0 = vector.load %arg1[%c0, %c0_0, %c0_1, %c0_2] : memref<1x8x8x128xbf16, #tpu.memory_space<vmem>>, vector<1x8x8x128xbf16>
    %1 = vector.shape_cast %0 : vector<1x8x8x128xbf16> to vector<64x128xbf16>
    %c0_3 = arith.constant 0 : index
    %c0_4 = arith.constant 0 : index
    %2 = vector.load %arg2[%c0_3, %c0_4] : memref<128x128xbf16, #tpu.memory_space<vmem>>, vector<128x128xbf16>
    %cst = arith.constant dense<0.000000e+00> : vector<64x128xf32>
    %3 = tpu.matmul %1, %2, %cst {dimension_numbers = #tpu.dot_dimension_numbers<[1], [0], [0], [1], [0, 0, 1, 1], [], []>} : vector<64x128xbf16>, vector<128x128xbf16>, vector<64x128xf32> -> vector<64x128xf32>
    %c0_5 = arith.constant 0 : index
    %c0_6 = arith.constant 0 : index
    %4 = vector.load %arg5[%c0_5, %c0_6] : memref<1x128xf32, #tpu.memory_space<vmem>>, vector<1x128xf32>
    %5 = vector.broadcast %4 : vector<1x128xf32> to vector<64x128xf32>
    %6 = arith.addf %3, %5 : vector<64x128xf32>
    %cst_7 = arith.constant 0.000000e+00 : f32
    %7 = vector.broadcast %cst_7 : f32 to vector<64x128xf32>
    %8 = arith.maximumf %6, %7 : vector<64x128xf32>
    %9 = tpu.iota {dimensions = array<i32: 2>} : vector<1x8x8x128xi32>
    %c0_i32 = arith.constant 0 : i32
    %10 = vector.broadcast %c0_i32 : i32 to vector<1x8x8x128xi32>
    %11 = arith.cmpi eq, %9, %10 : vector<1x8x8x128xi32>
    %c1_i32 = arith.constant 1 : i32
    %12 = tpu.dynamic_rotate %8 by %c1_i32 dim 0 : vector<64x128xf32>, i32 -> vector<64x128xf32>
    %13 = vector.shape_cast %12 : vector<64x128xf32> to vector<1x8x8x128xf32>
    %cst_8 = arith.constant 0.000000e+00 : f32
    %14 = vector.broadcast %cst_8 : f32 to vector<1x8x8x128xf32>
    %15 = arith.select %11, %14, %13 : vector<1x8x8x128xi1>, vector<1x8x8x128xf32>
    %c7_i32 = arith.constant 7 : i32
    %16 = vector.broadcast %c7_i32 : i32 to vector<1x8x8x128xi32>
    %17 = arith.cmpi eq, %9, %16 : vector<1x8x8x128xi32>
    %c63_i32 = arith.constant 63 : i32
    %18 = tpu.dynamic_rotate %8 by %c63_i32 dim 0 : vector<64x128xf32>, i32 -> vector<64x128xf32>
    %19 = vector.shape_cast %18 : vector<64x128xf32> to vector<1x8x8x128xf32>
    %cst_9 = arith.constant 0.000000e+00 : f32
    %20 = vector.broadcast %cst_9 : f32 to vector<1x8x8x128xf32>
    %21 = arith.select %17, %20, %19 : vector<1x8x8x128xi1>, vector<1x8x8x128xf32>
    %22 = arith.truncf %15 : vector<1x8x8x128xf32> to vector<1x8x8x128xbf16>
    %c0_10 = arith.constant 0 : index
    %c1 = arith.constant 1 : index
    %c0_11 = arith.constant 0 : index
    %c0_12 = arith.constant 0 : index
    %23 = vector.load %arg9[%c0_10, %c1, %c0_11, %c0_12] : memref<1x10x8x384xbf16, #tpu.memory_space<vmem>>, vector<1x8x8x128xbf16>
    tpu.vector_store %arg9[%c0_10, %c1, %c0_11, %c0_12], %22 {strides = array<i32>} : memref<1x10x8x384xbf16, #tpu.memory_space<vmem>>, vector<1x8x8x128xbf16>,
    %24 = arith.truncf %8 : vector<64x128xf32> to vector<64x128xbf16>
    %25 = vector.shape_cast %24 : vector<64x128xbf16> to vector<1x8x8x128xbf16>
    %c0_13 = arith.constant 0 : index
    %c1_14 = arith.constant 1 : index
    %c0_15 = arith.constant 0 : index
    %c128 = arith.constant 128 : index
    %26 = vector.load %arg9[%c0_13, %c1_14, %c0_15, %c128] : memref<1x10x8x384xbf16, #tpu.memory_space<vmem>>, vector<1x8x8x128xbf16>
    tpu.vector_store %arg9[%c0_13, %c1_14, %c0_15, %c128], %25 {strides = array<i32>} : memref<1x10x8x384xbf16, #tpu.memory_space<vmem>>, vector<1x8x8x128xbf16>,
    %27 = arith.truncf %21 : vector<1x8x8x128xf32> to vector<1x8x8x128xbf16>
    %c0_16 = arith.constant 0 : index
    %c1_17 = arith.constant 1 : index
    %c0_18 = arith.constant 0 : index
    %c256 = arith.constant 256 : index
    %28 = vector.load %arg9[%c0_16, %c1_17, %c0_18, %c256] : memref<1x10x8x384xbf16, #tpu.memory_space<vmem>>, vector<1x8x8x128xbf16>
    tpu.vector_store %arg9[%c0_16, %c1_17, %c0_18, %c256], %27 {strides = array<i32>} : memref<1x10x8x384xbf16, #tpu.memory_space<vmem>>, vector<1x8x8x128xbf16>,
    %cst_19 = arith.constant 0.000000e+00 : bf16
    %29 = vector.broadcast %cst_19 : bf16 to vector<1x1x8x384xbf16>
    %c0_20 = arith.constant 0 : index
    %c0_21 = arith.constant 0 : index
    %c0_22 = arith.constant 0 : index
    %c0_23 = arith.constant 0 : index
    %30 = vector.load %arg9[%c0_20, %c0_21, %c0_22, %c0_23] : memref<1x10x8x384xbf16, #tpu.memory_space<vmem>>, vector<1x1x8x384xbf16>
    tpu.vector_store %arg9[%c0_20, %c0_21, %c0_22, %c0_23], %29 {strides = array<i32>} : memref<1x10x8x384xbf16, #tpu.memory_space<vmem>>, vector<1x1x8x384xbf16>,
    %c0_24 = arith.constant 0 : index
    %c9 = arith.constant 9 : index
    %c0_25 = arith.constant 0 : index
    %c0_26 = arith.constant 0 : index
    %31 = vector.load %arg9[%c0_24, %c9, %c0_25, %c0_26] : memref<1x10x8x384xbf16, #tpu.memory_space<vmem>>, vector<1x1x8x384xbf16>
    tpu.vector_store %arg9[%c0_24, %c9, %c0_25, %c0_26], %29 {strides = array<i32>} : memref<1x10x8x384xbf16, #tpu.memory_space<vmem>>, vector<1x1x8x384xbf16>,
    %c0_27 = arith.constant 0 : index
    %c0_28 = arith.constant 0 : index
    %c0_29 = arith.constant 0 : index
    %c0_30 = arith.constant 0 : index
    %32 = vector.load %arg9[%c0_27, %c0_28, %c0_29, %c0_30] : memref<1x10x8x384xbf16, #tpu.memory_space<vmem>>, vector<1x8x8x384xbf16>
    %33 = vector.shape_cast %32 : vector<1x8x8x384xbf16> to vector<64x384xbf16>
    %c0_31 = arith.constant 0 : index
    %c0_32 = arith.constant 0 : index
    %c0_33 = arith.constant 0 : index
    %34 = vector.load %arg3[%c0_31, %c0_32, %c0_33] : memref<3x384x128xbf16, #tpu.memory_space<vmem>>, vector<1x384x128xbf16>
    %35 = vector.shape_cast %34 : vector<1x384x128xbf16> to vector<384x128xbf16>
    %cst_34 = arith.constant dense<0.000000e+00> : vector<64x128xf32>
    %36 = tpu.matmul %33, %35, %cst_34 {dimension_numbers = #tpu.dot_dimension_numbers<[1], [0], [0], [1], [0, 0, 1, 1], [], []>} : vector<64x384xbf16>, vector<384x128xbf16>, vector<64x128xf32> -> vector<64x128xf32>
    %c0_35 = arith.constant 0 : index
    %c1_36 = arith.constant 1 : index
    %c0_37 = arith.constant 0 : index
    %c0_38 = arith.constant 0 : index
    %37 = vector.load %arg9[%c0_35, %c1_36, %c0_37, %c0_38] : memref<1x10x8x384xbf16, #tpu.memory_space<vmem>>, vector<1x8x8x384xbf16>
    %38 = vector.shape_cast %37 : vector<1x8x8x384xbf16> to vector<64x384xbf16>
    %c1_39 = arith.constant 1 : index
    %c0_40 = arith.constant 0 : index
    %c0_41 = arith.constant 0 : index
    %39 = vector.load %arg3[%c1_39, %c0_40, %c0_41] : memref<3x384x128xbf16, #tpu.memory_space<vmem>>, vector<1x384x128xbf16>
    %40 = vector.shape_cast %39 : vector<1x384x128xbf16> to vector<384x128xbf16>
    %cst_42 = arith.constant dense<0.000000e+00> : vector<64x128xf32>
    %41 = tpu.matmul %38, %40, %cst_42 {dimension_numbers = #tpu.dot_dimension_numbers<[1], [0], [0], [1], [0, 0, 1, 1], [], []>} : vector<64x384xbf16>, vector<384x128xbf16>, vector<64x128xf32> -> vector<64x128xf32>
    %42 = arith.addf %36, %41 : vector<64x128xf32>
    %c0_43 = arith.constant 0 : index
    %c2 = arith.constant 2 : index
    %c0_44 = arith.constant 0 : index
    %c0_45 = arith.constant 0 : index
    %43 = vector.load %arg9[%c0_43, %c2, %c0_44, %c0_45] : memref<1x10x8x384xbf16, #tpu.memory_space<vmem>>, vector<1x8x8x384xbf16>
    %44 = vector.shape_cast %43 : vector<1x8x8x384xbf16> to vector<64x384xbf16>
    %c2_46 = arith.constant 2 : index
    %c0_47 = arith.constant 0 : index
    %c0_48 = arith.constant 0 : index
    %45 = vector.load %arg3[%c2_46, %c0_47, %c0_48] : memref<3x384x128xbf16, #tpu.memory_space<vmem>>, vector<1x384x128xbf16>
    %46 = vector.shape_cast %45 : vector<1x384x128xbf16> to vector<384x128xbf16>
    %cst_49 = arith.constant dense<0.000000e+00> : vector<64x128xf32>
    %47 = tpu.matmul %44, %46, %cst_49 {dimension_numbers = #tpu.dot_dimension_numbers<[1], [0], [0], [1], [0, 0, 1, 1], [], []>} : vector<64x384xbf16>, vector<384x128xbf16>, vector<64x128xf32> -> vector<64x128xf32>
    %48 = arith.addf %42, %47 : vector<64x128xf32>
    %c0_50 = arith.constant 0 : index
    %c0_51 = arith.constant 0 : index
    %49 = vector.load %arg6[%c0_50, %c0_51] : memref<1x128xf32, #tpu.memory_space<vmem>>, vector<1x128xf32>
    %50 = vector.broadcast %49 : vector<1x128xf32> to vector<64x128xf32>
    %51 = arith.addf %48, %50 : vector<64x128xf32>
    %cst_52 = arith.constant 0.000000e+00 : f32
    %52 = vector.broadcast %cst_52 : f32 to vector<64x128xf32>
    %53 = arith.maximumf %51, %52 : vector<64x128xf32>
    %54 = arith.truncf %53 : vector<64x128xf32> to vector<64x128xbf16>
    %c0_53 = arith.constant 0 : index
    %c0_54 = arith.constant 0 : index
    %55 = vector.load %arg4[%c0_53, %c0_54] : memref<128x128xbf16, #tpu.memory_space<vmem>>, vector<128x128xbf16>
    %cst_55 = arith.constant dense<0.000000e+00> : vector<64x128xf32>
    %56 = tpu.matmul %54, %55, %cst_55 {dimension_numbers = #tpu.dot_dimension_numbers<[1], [0], [0], [1], [0, 0, 1, 1], [], []>} : vector<64x128xbf16>, vector<128x128xbf16>, vector<64x128xf32> -> vector<64x128xf32>
    %c0_56 = arith.constant 0 : index
    %c0_57 = arith.constant 0 : index
    %57 = vector.load %arg7[%c0_56, %c0_57] : memref<1x128xf32, #tpu.memory_space<vmem>>, vector<1x128xf32>
    %58 = vector.broadcast %57 : vector<1x128xf32> to vector<64x128xf32>
    %59 = arith.addf %56, %58 : vector<64x128xf32>
    %60 = arith.extf %1 : vector<64x128xbf16> to vector<64x128xf32>
    %61 = arith.addf %59, %60 : vector<64x128xf32>
    %cst_58 = arith.constant 0.000000e+00 : f32
    %62 = vector.broadcast %cst_58 : f32 to vector<64x128xf32>
    %63 = arith.maximumf %61, %62 : vector<64x128xf32>
    %64 = vector.shape_cast %63 : vector<64x128xf32> to vector<1x8x8x128xf32>
    %c0_59 = arith.constant 0 : index
    %c0_60 = arith.constant 0 : index
    %c0_61 = arith.constant 0 : index
    %c0_62 = arith.constant 0 : index
    %65 = vector.load %arg8[%c0_59, %c0_60, %c0_61, %c0_62] : memref<1x8x8x128xf32, #tpu.memory_space<vmem>>, vector<1x8x8x128xf32>
    tpu.vector_store %arg8[%c0_59, %c0_60, %c0_61, %c0_62], %64 {strides = array<i32>} : memref<1x8x8x128xf32, #tpu.memory_space<vmem>>, vector<1x8x8x128xf32>,
    return
  }
  func.func @transform_0(%arg0: i32) -> (i32, i32, i32, i32) {
    %c0_i32 = arith.constant 0 : i32
    %c0_i32_0 = arith.constant 0 : i32
    %c0_i32_1 = arith.constant 0 : i32
    %c0_i32_2 = arith.constant 0 : i32
    return %arg0, %c0_i32, %c0_i32_0, %c0_i32_1 : i32, i32, i32, i32
  }
  func.func @transform_1(%arg0: i32) -> (i32, i32) {
    %c0_i32 = arith.constant 0 : i32
    %c0_i32_0 = arith.constant 0 : i32
    %c0_i32_1 = arith.constant 0 : i32
    return %c0_i32, %c0_i32_0 : i32, i32
  }
  func.func @transform_2(%arg0: i32) -> (i32, i32, i32) {
    %c0_i32 = arith.constant 0 : i32
    %c0_i32_0 = arith.constant 0 : i32
    %c0_i32_1 = arith.constant 0 : i32
    %c0_i32_2 = arith.constant 0 : i32
    return %c0_i32, %c0_i32_0, %c0_i32_1 : i32, i32, i32
  }
  func.func @transform_3(%arg0: i32) -> (i32, i32) {
    %c0_i32 = arith.constant 0 : i32
    %c0_i32_0 = arith.constant 0 : i32
    %c0_i32_1 = arith.constant 0 : i32
    return %c0_i32, %c0_i32_0 : i32, i32
  }
  func.func @transform_4(%arg0: i32) -> (i32, i32) {
    %c0_i32 = arith.constant 0 : i32
    %c0_i32_0 = arith.constant 0 : i32
    %c0_i32_1 = arith.constant 0 : i32
    return %c0_i32, %c0_i32_0 : i32, i32
  }
  func.func @transform_5(%arg0: i32) -> (i32, i32) {
    %c0_i32 = arith.constant 0 : i32
    %c0_i32_0 = arith.constant 0 : i32
    %c0_i32_1 = arith.constant 0 : i32
    return %c0_i32, %c0_i32_0 : i32, i32
  }
  func.func @transform_6(%arg0: i32) -> (i32, i32) {
    %c0_i32 = arith.constant 0 : i32
    %c0_i32_0 = arith.constant 0 : i32
    %c0_i32_1 = arith.constant 0 : i32
    return %c0_i32, %c0_i32_0 : i32, i32
  }
  func.func @transform_7(%arg0: i32) -> (i32, i32, i32, i32) {
    %c0_i32 = arith.constant 0 : i32
    %c0_i32_0 = arith.constant 0 : i32
    %c0_i32_1 = arith.constant 0 : i32
    %c0_i32_2 = arith.constant 0 : i32
    return %arg0, %c0_i32, %c0_i32_0, %c0_i32_1 : i32, i32, i32, i32
  }
}

</mosaic_0001>

<llo_original>
// kernel: tpu_custom_call.1
$region0: #{tpu_custom_call.1}
  #allocation0 [shape = 'u32[]', space=smem, size = 0x4, offset = 0x4, fixed_abs, tag = 'smem constant byte address 0x4 - core index']
  #allocation1 [shape = 'u32[144,128]{1,0:T(1,128)}', space=vmem, size = 0x12000, scoped, tag = 'internal scratch']
  #allocation2 [shape = 'bf16[1,10,8,384]{3,2,1,0:T(8,128)(2,1)}', space=vmem, size = 0xf000, scoped, tag = 'scratch operand']
  %s0 = inlined_call_operand.hbm [shape: bf16[2,8,8,128], index: 0, kind: input, shape index: {}]
  %s1 = inlined_call_operand.hbm [shape: bf16[128,128], index: 1, kind: input, shape index: {}]
  %s2 = inlined_call_operand.hbm [shape: bf16[3,384,128], index: 2, kind: input, shape index: {}]
  %s3 = inlined_call_operand.hbm [shape: bf16[128,128], index: 3, kind: input, shape index: {}]
  %s4 = inlined_call_operand.vmem [shape: f32[1,128], index: 4, kind: input, shape index: {}]
  %s5 = inlined_call_operand.vmem [shape: f32[1,128], index: 5, kind: input, shape index: {}]
  %s6 = inlined_call_operand.vmem [shape: f32[1,128], index: 6, kind: input, shape index: {}]
  %s7 = inlined_call_operand.hbm [shape: f32[2,8,8,128], index: 7, kind: output, shape index: {}]
  %s8 = sld [smem:[#allocation0]]
  $region77: #{tpu_custom_call.1} parent=0
    _
  %s10 = ssub.s32 1, %s8
  %s11 = scalar_select 0, %s10, %s8
  $region1: #{tpu_custom_call.1} parent=0
    #allocation3 [shape = 'u8[32768]{0}', space=vmem, size = 0x8000, scoped, tag = 'input window, operand 0']
    #allocation4 [shape = 's32[2]{0}', space=sflag, size = 0x8, scoped, tag = 'scoped memory for tpu_custom_call.1']
    #allocation5 [shape = 's32[2]{0}', space=sflag, size = 0x8, scoped, tag = 'scoped memory for tpu_custom_call.1']
    #allocation6 [shape = 'u8[32768]{0}', space=vmem, size = 0x8000, scoped, tag = 'input window, operand 1, single buffered']
    #allocation7 [shape = 's32[1]{0}', space=sflag, size = 0x4, scoped, tag = 'scoped memory for tpu_custom_call.1']
    #allocation8 [shape = 'u8[294912]{0}', space=vmem, size = 0x48000, scoped, tag = 'input window, operand 2, single buffered']
    #allocation9 [shape = 'u8[32768]{0}', space=vmem, size = 0x8000, scoped, tag = 'input window, operand 3, single buffered']
    #allocation10 [shape = 's32[1]{0}', space=sflag, size = 0x4, scoped, tag = 'scoped memory for tpu_custom_call.1']
    #allocation11 [shape = 'u8[65536]{0}', space=vmem, size = 0x10000, scoped, tag = 'output window, operand 0']
    %12 = vsyncpa [#allocation4], 0
    %s13 = scalar_lea.sflag [#allocation4], 1
    %14 = vsyncpa %s13, 0
    %15 = vsyncpa [#allocation7], 0
    %16 = vsyncpa [#allocation10], 0
    %17 = vsyncpa [#allocation5], 0
    %s18 = scalar_lea.sflag [#allocation5], 1
    %19 = vsyncpa %s18, 0
    loop: start=0, step=1, limit=4
    $region2: #{tpu_custom_call.1} parent=1 // loop_pre_header
      _
    $region3: #{tpu_custom_call.1} parent=1 // loop_header
      %s21 = sphi 0, %s25
      %p22 = scmp.ge.s32.totalorder %s21, 4
      %s31 = sphi 0, %s33
      %s34 = sphi 0, %s31
      %s35 = sphi 0, %s34
      %s51 = sphi 0, %s35
      %s55 = sphi 0, %s55
      %s57 = sphi 0, %s55
      %s58 = sphi 0, %s57
      %s72 = sphi 0, %s58
      %s76 = sphi 0, %s76
      %s78 = sphi 0, %s76
      %s79 = sphi 0, %s78
      %s93 = sphi 0, %s79
      %s97 = sphi 0, %s97
      %s99 = sphi 0, %s97
      %s100 = sphi 0, %s99
      %s114 = sphi 0, %s100
      %s118 = sphi 0, %s118
      %s120 = sphi 0, %s118
      %s121 = sphi 0, %s120
      %s135 = sphi 0, %s121
      %s139 = sphi 0, %s139
      %s141 = sphi 0, %s139
      %s142 = sphi 0, %s141
      %s156 = sphi 0, %s142
      %s160 = sphi 0, %s160
      %s162 = sphi 0, %s160
      %s163 = sphi 0, %s162
      %s177 = sphi 0, %s163
      %s183 = sphi 0, %s185
      %s186 = sphi 0, %s183
      %s187 = sphi 0, %s186
      %s203 = sphi 0, %s187
    $region4: #{tpu_custom_call.1} parent=1 // loop_header_branch
      %24 = sbr.rel (%p22) target = $region8
    $region5: #{tpu_custom_call.1} parent=1 // loop_body
      %s26 = ssub.s32 %s21, 1
      %s27 = ssub.s32 %s21, 2
      %s28 = sadd.s32 %s21, 1
      %s29 = ssub.s32 %s21, %s28
      %p30 = scmp.eq.s32.totalorder %s29, 0
      %s32 = sadd.s32 %s31, 1
      %s33 = scalar_select %p30, %s31, %s32
      %p36 = pneg %p30
      %p37 = scmp.eq.s32.totalorder %s21, 1
      %p38 = por %p36, %p37
      %p39 = scmp.ne.s32.totalorder %s31, %s34
      %p40 = scmp.eq.s32.totalorder %s21, 0
      %p41 = por %p39, %p40
      %p42 = scmp.ne.s32.totalorder %s31, %s34
      %p43 = scmp.eq.s32.totalorder %s26, 1
      %p44 = por %p42, %p43
      %p45 = scmp.ne.s32.totalorder %s34, %s35
      %p46 = scmp.eq.s32.totalorder %s26, 0
      %p47 = por %p45, %p46
      %p48 = scmp.ne.s32.totalorder %s34, %s35
      %p49 = scmp.eq.s32.totalorder %s27, 1
      %p50 = por %p48, %p49
      %p52 = scmp.ne.s32.totalorder %s35, %s51
      %p53 = scmp.eq.s32.totalorder %s27, 0
      %p54 = por %p52, %p53
      %s56 = sadd.s32 %s55, 1
      %p59 = scmp.eq.s32.totalorder %s21, 1
      %p60 = scmp.ne.s32.totalorder %s55, %s57
      %p61 = scmp.eq.s32.totalorder %s21, 0
      %p62 = por %p60, %p61
      %p63 = scmp.ne.s32.totalorder %s55, %s57
      %p64 = scmp.eq.s32.totalorder %s26, 1
      %p65 = por %p63, %p64
      %p66 = scmp.ne.s32.totalorder %s57, %s58
      %p67 = scmp.eq.s32.totalorder %s26, 0
      %p68 = por %p66, %p67
      %p69 = scmp.ne.s32.totalorder %s57, %s58
      %p70 = scmp.eq.s32.totalorder %s27, 1
      %p71 = por %p69, %p70
      %p73 = scmp.ne.s32.totalorder %s58, %s72
      %p74 = scmp.eq.s32.totalorder %s27, 0
      %p75 = por %p73, %p74
      %s77 = sadd.s32 %s76, 1
      %p80 = scmp.eq.s32.totalorder %s21, 1
      %p81 = scmp.ne.s32.totalorder %s76, %s78
      %p82 = scmp.eq.s32.totalorder %s21, 0
      %p83 = por %p81, %p82
      %p84 = scmp.ne.s32.totalorder %s76, %s78
      %p85 = scmp.eq.s32.totalorder %s26, 1
      %p86 = por %p84, %p85
      %p87 = scmp.ne.s32.totalorder %s78, %s79
      %p88 = scmp.eq.s32.totalorder %s26, 0
      %p89 = por %p87, %p88
      %p90 = scmp.ne.s32.totalorder %s78, %s79
      %p91 = scmp.eq.s32.totalorder %s27, 1
      %p92 = por %p90, %p91
      %p94 = scmp.ne.s32.totalorder %s79, %s93
      %p95 = scmp.eq.s32.totalorder %s27, 0
      %p96 = por %p94, %p95
      %s98 = sadd.s32 %s97, 1
      %p101 = scmp.eq.s32.totalorder %s21, 1
      %p102 = scmp.ne.s32.totalorder %s97, %s99
      %p103 = scmp.eq.s32.totalorder %s21, 0
      %p104 = por %p102, %p103
      %p105 = scmp.ne.s32.totalorder %s97, %s99
      %p106 = scmp.eq.s32.totalorder %s26, 1
      %p107 = por %p105, %p106
      %p108 = scmp.ne.s32.totalorder %s99, %s100
      %p109 = scmp.eq.s32.totalorder %s26, 0
      %p110 = por %p108, %p109
      %p111 = scmp.ne.s32.totalorder %s99, %s100
      %p112 = scmp.eq.s32.totalorder %s27, 1
      %p113 = por %p111, %p112
      %p115 = scmp.ne.s32.totalorder %s100, %s114
      %p116 = scmp.eq.s32.totalorder %s27, 0
      %p117 = por %p115, %p116
      %s119 = sadd.s32 %s118, 1
      %p122 = scmp.eq.s32.totalorder %s21, 1
      %p123 = scmp.ne.s32.totalorder %s118, %s120
      %p124 = scmp.eq.s32.totalorder %s21, 0
      %p125 = por %p123, %p124
      %p126 = scmp.ne.s32.totalorder %s118, %s120
      %p127 = scmp.eq.s32.totalorder %s26, 1
      %p128 = por %p126, %p127
      %p129 = scmp.ne.s32.totalorder %s120, %s121
      %p130 = scmp.eq.s32.totalorder %s26, 0
      %p131 = por %p129, %p130
      %p132 = scmp.ne.s32.totalorder %s120, %s121
      %p133 = scmp.eq.s32.totalorder %s27, 1
      %p134 = por %p132, %p133
      %p136 = scmp.ne.s32.totalorder %s121, %s135
      %p137 = scmp.eq.s32.totalorder %s27, 0
      %p138 = por %p136, %p137
      %s140 = sadd.s32 %s139, 1
      %p143 = scmp.eq.s32.totalorder %s21, 1
      %p144 = scmp.ne.s32.totalorder %s139, %s141
      %p145 = scmp.eq.s32.totalorder %s21, 0
      %p146 = por %p144, %p145
      %p147 = scmp.ne.s32.totalorder %s139, %s141
      %p148 = scmp.eq.s32.totalorder %s26, 1
      %p149 = por %p147, %p148
      %p150 = scmp.ne.s32.totalorder %s141, %s142
      %p151 = scmp.eq.s32.totalorder %s26, 0
      %p152 = por %p150, %p151
      %p153 = scmp.ne.s32.totalorder %s141, %s142
      %p154 = scmp.eq.s32.totalorder %s27, 1
      %p155 = por %p153, %p154
      %p157 = scmp.ne.s32.totalorder %s142, %s156
      %p158 = scmp.eq.s32.totalorder %s27, 0
      %p159 = por %p157, %p158
      %s161 = sadd.s32 %s160, 1
      %p164 = scmp.eq.s32.totalorder %s21, 1
      %p165 = scmp.ne.s32.totalorder %s160, %s162
      %p166 = scmp.eq.s32.totalorder %s21, 0
      %p167 = por %p165, %p166
      %p168 = scmp.ne.s32.totalorder %s160, %s162
      %p169 = scmp.eq.s32.totalorder %s26, 1
      %p170 = por %p168, %p169
      %p171 = scmp.ne.s32.totalorder %s162, %s163
      %p172 = scmp.eq.s32.totalorder %s26, 0
      %p173 = por %p171, %p172
      %p174 = scmp.ne.s32.totalorder %s162, %s163
      %p175 = scmp.eq.s32.totalorder %s27, 1
      %p176 = por %p174, %p175
      %p178 = scmp.ne.s32.totalorder %s163, %s177
      %p179 = scmp.eq.s32.totalorder %s27, 0
      %p180 = por %p178, %p179
      %s181 = ssub.s32 %s21, %s28
      %p182 = scmp.eq.s32.totalorder %s181, 0
      %s184 = sadd.s32 %s183, 1
      %s185 = scalar_select %p182, %s183, %s184
      %p188 = pneg %p182
      %p189 = scmp.eq.s32.totalorder %s21, 1
      %p190 = por %p188, %p189
      %p191 = scmp.ne.s32.totalorder %s183, %s186
      %p192 = scmp.eq.s32.totalorder %s21, 0
      %p193 = por %p191, %p192
      %p194 = scmp.ne.s32.totalorder %s183, %s186
      %p195 = scmp.eq.s32.totalorder %s26, 1
      %p196 = por %p194, %p195
      %p197 = scmp.ne.s32.totalorder %s186, %s187
      %p198 = scmp.eq.s32.totalorder %s26, 0
      %p199 = por %p197, %p198
      %p200 = scmp.ne.s32.totalorder %s186, %s187
      %p201 = scmp.eq.s32.totalorder %s27, 1
      %p202 = por %p200, %p201
      %p204 = scmp.ne.s32.totalorder %s187, %s203
      %p205 = scmp.eq.s32.totalorder %s27, 0
      %p206 = por %p204, %p205
      %p207 = scmp.le.s32.totalorder 1, %s21
      %p208 = scmp.lt.s32.totalorder %s21, 3
      %p209 = pnand %p207, %p208
      %p210 = pneg %p209
      // Predicated region
      $region9: #{tpu_custom_call.1} parent=5 // pred_check
        _
      $region10: #{tpu_custom_call.1} parent=5 // pred_check_branch
        %212 = sbr.rel (%p209) target = $region12
      $region11: #{tpu_custom_call.1} parent=5 // pred_region
        %s213 = ssub.s32 %s21, 1
        // Predicated region
        $region13: #{tpu_custom_call.1} parent=11 // pred_check
          %p214 = pneg %p68
        $region14: #{tpu_custom_call.1} parent=11 // pred_check_branch
          %216 = sbr.rel (%p214) target = $region16
        $region15: #{tpu_custom_call.1} parent=11 // pred_region
          %s218 = ssub.s32 1024, 1024
          %219 = vsyncadd [#allocation7], %s218
          %s220 = sshll.u32 [#allocation6], 4
          %s221 = int_to_ptr.vmem [resolvable:$true] %s220
          %226 = dma.hbm_to_vmem [thread:$0]  %s1, 1024, %s221, [#allocation7], 64, 64, 4
        $region16: #{tpu_custom_call.1} parent=11 // pred_fallthru
          _
        // Predicated region
        $region17: #{tpu_custom_call.1} parent=11 // pred_check
          %p227 = pneg %p89
        $region18: #{tpu_custom_call.1} parent=11 // pred_check_branch
          %229 = sbr.rel (%p227) target = $region20
        $region19: #{tpu_custom_call.1} parent=11 // pred_region
          %s231 = ssub.s32 9216, 9216
          %232 = vsyncadd [#allocation7], %s231
          %s233 = sshll.u32 [#allocation8], 4
          %s234 = int_to_ptr.vmem [resolvable:$true] %s233
          %239 = dma.hbm_to_vmem [thread:$0]  %s2, 9216, %s234, [#allocation7], 64, 64, 4
        $region20: #{tpu_custom_call.1} parent=11 // pred_fallthru
          _
        // Predicated region
        $region21: #{tpu_custom_call.1} parent=11 // pred_check
          %p240 = pneg %p110
        $region22: #{tpu_custom_call.1} parent=11 // pred_check_branch
          %242 = sbr.rel (%p240) target = $region24
        $region23: #{tpu_custom_call.1} parent=11 // pred_region
          %s244 = ssub.s32 1024, 1024
          %245 = vsyncadd [#allocation10], %s244
          %s246 = sshll.u32 [#allocation9], 4
          %s247 = int_to_ptr.vmem [resolvable:$true] %s246
          %252 = dma.hbm_to_vmem [thread:$0]  %s3, 1024, %s247, [#allocation10], 64, 64, 4
        $region24: #{tpu_custom_call.1} parent=11 // pred_fallthru
          _
        // Predicated region
        $region25: #{tpu_custom_call.1} parent=11 // pred_check
          %p253 = pneg %p131
        $region26: #{tpu_custom_call.1} parent=11 // pred_check_branch
          %255 = sbr.rel (%p253) target = $region28
        $region27: #{tpu_custom_call.1} parent=11 // pred_region
          _
        $region28: #{tpu_custom_call.1} parent=11 // pred_fallthru
          _
        // Predicated region
        $region29: #{tpu_custom_call.1} parent=11 // pred_check
          %p256 = pneg %p152
        $region30: #{tpu_custom_call.1} parent=11 // pred_check_branch
          %258 = sbr.rel (%p256) target = $region32
        $region31: #{tpu_custom_call.1} parent=11 // pred_region
          _
        $region32: #{tpu_custom_call.1} parent=11 // pred_fallthru
          _
        // Predicated region
        $region33: #{tpu_custom_call.1} parent=11 // pred_check
          %p259 = pneg %p173
        $region34: #{tpu_custom_call.1} parent=11 // pred_check_branch
          %261 = sbr.rel (%p259) target = $region36
        $region35: #{tpu_custom_call.1} parent=11 // pred_region
          _
        $region36: #{tpu_custom_call.1} parent=11 // pred_fallthru
          _
      $region12: #{tpu_custom_call.1} parent=5 // pred_fallthru
        _
      %p262 = scmp.lt.s32.totalorder %s21, 2
      // Predicated region
      $region37: #{tpu_custom_call.1} parent=5 // pred_check
        %p263 = pneg %p262
      $region38: #{tpu_custom_call.1} parent=5 // pred_check_branch
        %265 = sbr.rel (%p263) target = $region40
      $region39: #{tpu_custom_call.1} parent=5 // pred_region
        // Predicated region
        $region41: #{tpu_custom_call.1} parent=39 // pred_check
          %p266 = pneg %p41
        $region42: #{tpu_custom_call.1} parent=39 // pred_check_branch
          %268 = sbr.rel (%p266) target = $region44
        $region43: #{tpu_custom_call.1} parent=39 // pred_region
          %s269 = sand.u32 %s31, 1
          %s270 = scalar_lea.sflag [#allocation4], %s269
          %s271 = sand.u32 %s31, 1
          %s272 = smul.addr %s271, 32
          %s273 = scalar_lea.vmem [#allocation3], %s272
          %s275 = ssub.s32 512, 512
          %276 = vsyncadd %s270, %s275
          %s277 = smul.addr %s21, 8
          %s278 = smul.addr %s277, 64
          %s279 = scalar_lea.hbm %s0, %s278
          %s280 = sshll.u32 %s273, 4
          %s281 = int_to_ptr.vmem [resolvable:$true] %s280
          %286 = dma.hbm_to_vmem [thread:$0]  %s279, 512, %s281, %s270, 64, 64, 4
        $region44: #{tpu_custom_call.1} parent=39 // pred_fallthru
          _
      $region40: #{tpu_custom_call.1} parent=5 // pred_fallthru
        _
      %p287 = scmp.le.s32.totalorder 1, %s21
      %p288 = scmp.lt.s32.totalorder %s21, 3
      %p289 = pnand %p287, %p288
      %p290 = pneg %p289
      // Predicated region
      $region45: #{tpu_custom_call.1} parent=5 // pred_check
        _
      $region46: #{tpu_custom_call.1} parent=5 // pred_check_branch
        %292 = sbr.rel (%p289) target = $region48
      $region47: #{tpu_custom_call.1} parent=5 // pred_region
        %s293 = ssub.s32 %s21, 1
        %s294 = sand.u32 %s34, 1
        %s295 = scalar_lea.sflag [#allocation4], %s294
        %s296 = sand.u32 %s34, 1
        %s297 = smul.addr %s296, 32
        %s298 = scalar_lea.vmem [#allocation3], %s297
        // Predicated region
        $region49: #{tpu_custom_call.1} parent=47 // pred_check
          %p299 = pneg %p47
        $region50: #{tpu_custom_call.1} parent=47 // pred_check_branch
          %301 = sbr.rel (%p299) target = $region52
        $region51: #{tpu_custom_call.1} parent=47 // pred_region
          %302 = dma.done %s295, 512
        $region52: #{tpu_custom_call.1} parent=47 // pred_fallthru
          _
        // Predicated region
        $region53: #{tpu_custom_call.1} parent=47 // pred_check
          %p303 = pneg %p68
        $region54: #{tpu_custom_call.1} parent=47 // pred_check_branch
          %305 = sbr.rel (%p303) target = $region56
        $region55: #{tpu_custom_call.1} parent=47 // pred_region
          %306 = dma.done [#allocation7], 1024
        $region56: #{tpu_custom_call.1} parent=47 // pred_fallthru
          _
        // Predicated region
        $region57: #{tpu_custom_call.1} parent=47 // pred_check
          %p307 = pneg %p89
        $region58: #{tpu_custom_call.1} parent=47 // pred_check_branch
          %309 = sbr.rel (%p307) target = $region60
        $region59: #{tpu_custom_call.1} parent=47 // pred_region
          %310 = dma.done [#allocation7], 9216
        $region60: #{tpu_custom_call.1} parent=47 // pred_fallthru
          _
        // Predicated region
        $region61: #{tpu_custom_call.1} parent=47 // pred_check
          %p311 = pneg %p110
        $region62: #{tpu_custom_call.1} parent=47 // pred_check_branch
          %313 = sbr.rel (%p311) target = $region64
        $region63: #{tpu_custom_call.1} parent=47 // pred_region
          %314 = dma.done [#allocation10], 1024
        $region64: #{tpu_custom_call.1} parent=47 // pred_fallthru
          _
        %s315 = sand.u32 %s34, 1
        %s316 = scalar_lea.sflag [#allocation4], %s315
        %s317 = sand.u32 %s34, 1
        %s318 = smul.addr %s317, 32
        %s319 = scalar_lea.vmem [#allocation3], %s318
        %p320 = pneg %p47
        %p321 = pneg %p44
        %p322 = pneg %p68
        %p323 = pneg %p65
        %p324 = pneg %p89
        %p325 = pneg %p86
        %p326 = pneg %p110
        %p327 = pneg %p107
        %p328 = pneg %p131
        %p329 = pneg %p128
        %p330 = pneg %p152
        %p331 = pneg %p149
        %p332 = pneg %p173
        %p333 = pneg %p170
        %p334 = pneg %p199
        %p335 = pneg %p196
        %s336 = sand.u32 %s186, 1
        %s337 = scalar_lea.sflag [#allocation5], %s336
        %s338 = sand.u32 %s186, 1
        %s339 = smul.addr %s338, 64
        %s340 = scalar_lea.vmem [#allocation11], %s339
        %v342 = vld [vmem:[%s298] sm:$0xf]
        %v343 = vld [vmem:[%s298 + $0x4] sm:$0xf]
        %v344 = vld [vmem:[%s298 + $0x8] sm:$0xf]
        %v345 = vld [vmem:[%s298 + $0xc] sm:$0xf]
        %v346 = vld [vmem:[%s298 + $0x10] sm:$0xf]
        %v347 = vld [vmem:[%s298 + $0x14] sm:$0xf]
        %v348 = vld [vmem:[%s298 + $0x18] sm:$0xf]
        %v349 = vld [vmem:[%s298 + $0x1c] sm:$0xf]
        %v350 = vld [vmem:[#allocation6] sm:$0xf]
        %v351 = vld [vmem:[#allocation6 + $0x4] sm:$0xf]
        %v352 = vld [vmem:[#allocation6 + $0x8] sm:$0xf]
        %v353 = vld [vmem:[#allocation6 + $0xc] sm:$0xf]
        %v354 = vld [vmem:[#allocation6 + $0x10] sm:$0xf]
        %v355 = vld [vmem:[#allocation6 + $0x14] sm:$0xf]
        %v356 = vld [vmem:[#allocation6 + $0x18] sm:$0xf]
        %v357 = vld [vmem:[#allocation6 + $0x1c] sm:$0xf]
        %v358 = vld [vmem:[#allocation6 + $0x20] sm:$0xf]
        %v359 = vld [vmem:[#allocation6 + $0x24] sm:$0xf]
        %v360 = vld [vmem:[#allocation6 + $0x28] sm:$0xf]
        %v361 = vld [vmem:[#allocation6 + $0x2c] sm:$0xf]
        %v362 = vld [vmem:[#allocation6 + $0x30] sm:$0xf]
        %v363 = vld [vmem:[#allocation6 + $0x34] sm:$0xf]
        %v364 = vld [vmem:[#allocation6 + $0x38] sm:$0xf]
        %v365 = vld [vmem:[#allocation6 + $0x3c] sm:$0xf]
        %v366 = vld [vmem:[%s4] sm:$0x1]
        %v368 = vlaneseq
        %v369 = vshrl.u32 %v368, 7
        %v370 = vsub.s32 0, %v369
        %v371 = vrot.slane %v366, %v370
        %v381 = vunpack.c.l.b16 %v342
        %v382 = vunpack.c.l.b16 %v343
        %v383 = vunpack.c.l.b16 %v344
        %v384 = vunpack.c.l.b16 %v345
        %v385 = vunpack.c.l.b16 %v346
        %v386 = vunpack.c.l.b16 %v347
        %v387 = vunpack.c.l.b16 %v348
        %v388 = vunpack.c.l.b16 %v349
        %v389 = vpack.c.b16 %v382, %v381
        %v390 = vpack.c.b16 %v384, %v383
        %v391 = vpack.c.b16 %v386, %v385
        %v392 = vpack.c.b16 %v388, %v387
        %v413 = vunpack.c.l.b16 %v350
        %v414 = vunpack.c.l.b16 %v351
        %v415 = vunpack.c.l.b16 %v352
        %v416 = vunpack.c.l.b16 %v353
        %v417 = vunpack.c.l.b16 %v354
        %v418 = vunpack.c.l.b16 %v355
        %v419 = vunpack.c.l.b16 %v356
        %v420 = vunpack.c.l.b16 %v357
        %v421 = vunpack.c.l.b16 %v358
        %v422 = vunpack.c.l.b16 %v359
        %v423 = vunpack.c.l.b16 %v360
        %v424 = vunpack.c.l.b16 %v361
        %v425 = vunpack.c.l.b16 %v362
        %v426 = vunpack.c.l.b16 %v363
        %v427 = vunpack.c.l.b16 %v364
        %v428 = vunpack.c.l.b16 %v365
        %v429 = vpack.c.b16 %v414, %v413
        %v430 = vpack.c.b16 %v416, %v415
        %v431 = vpack.c.b16 %v418, %v417
        %v432 = vpack.c.b16 %v420, %v419
        %v433 = vpack.c.b16 %v422, %v421
        %v434 = vpack.c.b16 %v424, %v423
        %v435 = vpack.c.b16 %v426, %v425
        %v436 = vpack.c.b16 %v428, %v427
        %445 = vmatprep.subr.bf16.mxu0 0
        %446 = vmatpush1.bf16.msra.mxu0 %v436
        %447 = vmatprep.subr.bf16.mxu0 0
        %448 = vmatpush1.bf16.msra.mxu0 %v435
        %449 = vmatprep.subr.bf16.mxu0 0
        %450 = vmatpush1.bf16.msra.mxu0 %v434
        %451 = vmatprep.subr.bf16.mxu0 0
        %452 = vmatpush1.bf16.msra.mxu0 %v433
        %453 = vmatprep.subr.bf16.mxu0 0
        %454 = vmatpush1.bf16.msra.mxu0 %v432
        %455 = vmatprep.subr.bf16.mxu0 0
        %456 = vmatpush1.bf16.msra.mxu0 %v431
        %457 = vmatprep.subr.bf16.mxu0 0
        %458 = vmatpush1.bf16.msra.mxu0 %v430
        %459 = vmatprep.subr.bf16.mxu0 0
        %460 = vmatpush1.bf16.msra.mxu0 %v429
        %461 = vmatprep.subr.bf16.mxu0 0
        %462 = vmatpush2.bf16.msra.mxu0 0
        %463 = vmatprep.subr.bf16.mxu0 0
        %464 = vmatpush2.bf16.msra.mxu0 0
        %465 = vmatprep.subr.bf16.mxu0 0
        %466 = vmatpush2.bf16.msra.mxu0 0
        %467 = vmatprep.subr.bf16.mxu0 0
        %468 = vmatpush2.bf16.msra.mxu0 0
        %469 = vmatprep.subr.bf16.mxu0 0
        %470 = vmatpush2.bf16.msra.mxu0 0
        %471 = vmatprep.subr.bf16.mxu0 0
        %472 = vmatpush2.bf16.msra.mxu0 0
        %473 = vmatprep.subr.bf16.mxu0 0
        %474 = vmatpush2.bf16.msra.mxu0 0
        %475 = vmatprep.subr.bf16.mxu0 0
        %476 = vmatpush2.bf16.msra.mxu0 0
        %477 = vmatprep.mubr.bf16.mxu0 0
        %478 = vmatmul.mubr.bf16.gmra.mxu0 %v389
        %v479 = vpop.f32.mrf.mxu0
        %v480 = vadd.f32 %v371, %v479
        %v481 = vpop.f32.mrf.mxu0
        %v482 = vpop.f32.mrf.mxu0
        %v483 = vadd.f32 %v371, %v482
        %v484 = vpop.f32.mrf.mxu0
        %485 = vmatprep.mubr.bf16.mxu0 0
        %486 = vmatmul.mubr.bf16.gmra.mxu0 %v390
        %v487 = vpop.f32.mrf.mxu0
        %v488 = vadd.f32 %v371, %v487
        %v489 = vpop.f32.mrf.mxu0
        %v490 = vpop.f32.mrf.mxu0
        %v491 = vadd.f32 %v371, %v490
        %v492 = vpop.f32.mrf.mxu0
        %493 = vmatprep.mubr.bf16.mxu0 0
        %494 = vmatmul.mubr.bf16.gmra.mxu0 %v391
        %v495 = vpop.f32.mrf.mxu0
        %v496 = vadd.f32 %v371, %v495
        %v497 = vpop.f32.mrf.mxu0
        %v498 = vpop.f32.mrf.mxu0
        %v499 = vadd.f32 %v371, %v498
        %v500 = vpop.f32.mrf.mxu0
        %501 = vmatprep.mubr.bf16.mxu0 0
        %502 = vmatmul.mubr.bf16.gmra.mxu0 %v392
        %v503 = vpop.f32.mrf.mxu0
        %v504 = vadd.f32 %v371, %v503
        %v505 = vpop.f32.mrf.mxu0
        %v506 = vpop.f32.mrf.mxu0
        %v507 = vadd.f32 %v371, %v506
        %v508 = vpop.f32.mrf.mxu0
        %509 = vdwg.mxu0
        %v510 = vmax.f32 %v480, 0.0
        %v511 = vmax.f32 %v483, 0.0
        %v512 = vmax.f32 %v488, 0.0
        %v513 = vmax.f32 %v491, 0.0
        %v514 = vmax.f32 %v496, 0.0
        %v515 = vmax.f32 %v499, 0.0
        %v516 = vmax.f32 %v504, 0.0
        %v517 = vmax.f32 %v507, 0.0
        %v518 = vlaneseq
        %v519 = vshrl.u32 %v518, 7
        %vm520 = vcmp.eq.s32.totalorder %v519, 0
        %v521 = vrot.slane %v510, 7
        %v522 = vrot.slane %v511, 7
        %v523 = vrot.slane %v512, 7
        %v524 = vrot.slane %v513, 7
        %v525 = vrot.slane %v514, 7
        %v526 = vrot.slane %v515, 7
        %v527 = vrot.slane %v516, 7
        %v528 = vrot.slane %v517, 7
        %vm529 = vcmp.lt.s32.totalorder %v519, 1
        %v530 = vsel %vm529, %v527, %v528
        %v531 = vsel %vm529, %v526, %v527
        %v532 = vsel %vm529, %v525, %v526
        %v533 = vsel %vm529, %v524, %v525
        %v534 = vsel %vm529, %v523, %v524
        %v535 = vsel %vm529, %v522, %v523
        %v536 = vsel %vm529, %v521, %v522
        %v537 = vsel %vm529, %v528, %v521
        %v538 = vsel %vm520, 0.0, %v537
        %v539 = vsel %vm520, 0.0, %v536
        %v540 = vsel %vm520, 0.0, %v535
        %v541 = vsel %vm520, 0.0, %v534
        %v542 = vsel %vm520, 0.0, %v533
        %v543 = vsel %vm520, 0.0, %v532
        %v544 = vsel %vm520, 0.0, %v531
        %v545 = vsel %vm520, 0.0, %v530
        %vm546 = vcmp.eq.s32.totalorder %v519, 7
        %v547 = vrot.slane %v510, 1
        %v548 = vrot.slane %v511, 1
        %v549 = vrot.slane %v512, 1
        %v550 = vrot.slane %v513, 1
        %v551 = vrot.slane %v514, 1
        %v552 = vrot.slane %v515, 1
        %v553 = vrot.slane %v516, 1
        %v554 = vrot.slane %v517, 1
        %vm555 = vcmp.lt.s32.totalorder %v519, 7
        %v556 = vsel %vm555, %v553, %v554
        %v557 = vsel %vm555, %v552, %v553
        %v558 = vsel %vm555, %v551, %v552
        %v559 = vsel %vm555, %v550, %v551
        %v560 = vsel %vm555, %v549, %v550
        %v561 = vsel %vm555, %v548, %v549
        %v562 = vsel %vm555, %v547, %v548
        %v563 = vsel %vm555, %v554, %v547
        %v564 = vsel %vm546, 0.0, %v562
        %v565 = vsel %vm546, 0.0, %v561
        %v566 = vsel %vm546, 0.0, %v560
        %v567 = vsel %vm546, 0.0, %v559
        %v568 = vsel %vm546, 0.0, %v558
        %v569 = vsel %vm546, 0.0, %v557
        %v570 = vsel %vm546, 0.0, %v556
        %v571 = vsel %vm546, 0.0, %v563
        %v572 = vpack.c.bf16 %v538, %v538
        %v573 = vpack.c.bf16 %v539, %v539
        %v574 = vpack.c.bf16 %v540, %v540
        %v575 = vpack.c.bf16 %v541, %v541
        %v576 = vpack.c.bf16 %v542, %v542
        %v577 = vpack.c.bf16 %v543, %v543
        %v578 = vpack.c.bf16 %v544, %v544
        %v579 = vpack.c.bf16 %v545, %v545
        %s580 = scalar_lea.vmem [#allocation2], 12
        %581 = vst [vmem:[%s580] sm:$0xf] %v572
        %582 = vst [vmem:[%s580 + $0xc] sm:$0xf] %v573
        %583 = vst [vmem:[%s580 + $0x18] sm:$0xf] %v574
        %584 = vst [vmem:[%s580 + $0x24] sm:$0xf] %v575
        %585 = vst [vmem:[%s580 + $0x30] sm:$0xf] %v576
        %586 = vst [vmem:[%s580 + $0x3c] sm:$0xf] %v577
        %587 = vst [vmem:[%s580 + $0x48] sm:$0xf] %v578
        %588 = vst [vmem:[%s580 + $0x54] sm:$0xf] %v579
        %v589 = vpack.c.bf16 %v511, %v510
        %v590 = vpack.c.bf16 %v513, %v512
        %v591 = vpack.c.bf16 %v515, %v514
        %v592 = vpack.c.bf16 %v517, %v516
        %v597 = vunpack.c.l.b16 %v589
        %v598 = vunpack.c.h.b16 %v589
        %v599 = vunpack.c.l.b16 %v590
        %v600 = vunpack.c.h.b16 %v590
        %v601 = vunpack.c.l.b16 %v591
        %v602 = vunpack.c.h.b16 %v591
        %v603 = vunpack.c.l.b16 %v592
        %v604 = vunpack.c.h.b16 %v592
        %v605 = vpack.c.b16 %v597, %v597
        %v606 = vpack.c.b16 %v598, %v598
        %v607 = vpack.c.b16 %v599, %v599
        %v608 = vpack.c.b16 %v600, %v600
        %v609 = vpack.c.b16 %v601, %v601
        %v610 = vpack.c.b16 %v602, %v602
        %v611 = vpack.c.b16 %v603, %v603
        %v612 = vpack.c.b16 %v604, %v604
        %621 = vst [vmem:[%s580 + $0x4] sm:$0xf] %v605
        %622 = vst [vmem:[%s580 + $0x10] sm:$0xf] %v606
        %623 = vst [vmem:[%s580 + $0x1c] sm:$0xf] %v607
        %624 = vst [vmem:[%s580 + $0x28] sm:$0xf] %v608
        %625 = vst [vmem:[%s580 + $0x34] sm:$0xf] %v609
        %626 = vst [vmem:[%s580 + $0x40] sm:$0xf] %v610
        %627 = vst [vmem:[%s580 + $0x4c] sm:$0xf] %v611
        %628 = vst [vmem:[%s580 + $0x58] sm:$0xf] %v612
        %v629 = vpack.c.bf16 %v564, %v564
        %v630 = vpack.c.bf16 %v565, %v565
        %v631 = vpack.c.bf16 %v566, %v566
        %v632 = vpack.c.bf16 %v567, %v567
        %v633 = vpack.c.bf16 %v568, %v568
        %v634 = vpack.c.bf16 %v569, %v569
        %v635 = vpack.c.bf16 %v570, %v570
        %v636 = vpack.c.bf16 %v571, %v571
        %637 = vst [vmem:[%s580 + $0x8] sm:$0xf] %v629
        %638 = vst [vmem:[%s580 + $0x14] sm:$0xf] %v630
        %639 = vst [vmem:[%s580 + $0x20] sm:$0xf] %v631
        %640 = vst [vmem:[%s580 + $0x2c] sm:$0xf] %v632
        %641 = vst [vmem:[%s580 + $0x38] sm:$0xf] %v633
        %642 = vst [vmem:[%s580 + $0x44] sm:$0xf] %v634
        %643 = vst [vmem:[%s580 + $0x50] sm:$0xf] %v635
        %644 = vst [vmem:[%s580 + $0x5c] sm:$0xf] %v636
        %645 = vst [vmem:[#allocation2] sm:$0xff] 0
        %646 = vst [vmem:[#allocation2 + $0x8] sm:$0xf] 0
        %s647 = scalar_lea.vmem [#allocation2], 108
        %648 = vst [vmem:[%s647] sm:$0xff] 0
        %649 = vst [vmem:[%s647 + $0x8] sm:$0xf] 0
        %v650 = vld [vmem:[#allocation2] sm:$0xff]
        %v651 = vld [vmem:[#allocation2 + $0x8] sm:$0xf]
        %v652 = vld [vmem:[#allocation2 + $0xc] sm:$0xff]
        %v653 = vld [vmem:[#allocation2 + $0x14] sm:$0xf]
        %v654 = vld [vmem:[#allocation2 + $0x18] sm:$0xff]
        %v655 = vld [vmem:[#allocation2 + $0x20] sm:$0xf]
        %v656 = vld [vmem:[#allocation2 + $0x24] sm:$0xff]
        %v657 = vld [vmem:[#allocation2 + $0x2c] sm:$0xf]
        %v658 = vld [vmem:[#allocation2 + $0x30] sm:$0xff]
        %v659 = vld [vmem:[#allocation2 + $0x38] sm:$0xf]
        %v660 = vld [vmem:[#allocation2 + $0x3c] sm:$0xff]
        %v661 = vld [vmem:[#allocation2 + $0x44] sm:$0xf]
        %v662 = vld [vmem:[#allocation2 + $0x48] sm:$0xff]
        %v663 = vld [vmem:[#allocation2 + $0x50] sm:$0xf]
        %v664 = vld [vmem:[#allocation2 + $0x54] sm:$0xff]
        %v665 = vld [vmem:[#allocation2 + $0x5c] sm:$0xf]
        %v666 = vld [vmem:[#allocation8] sm:$0xf]
        %v667 = vld [vmem:[#allocation8 + $0x4] sm:$0xf]
        %v668 = vld [vmem:[#allocation8 + $0x8] sm:$0xf]
        %v669 = vld [vmem:[#allocation8 + $0xc] sm:$0xf]
        %v670 = vld [vmem:[#allocation8 + $0x10] sm:$0xf]
        %v671 = vld [vmem:[#allocation8 + $0x14] sm:$0xf]
        %v672 = vld [vmem:[#allocation8 + $0x18] sm:$0xf]
        %v673 = vld [vmem:[#allocation8 + $0x1c] sm:$0xf]
        %v674 = vld [vmem:[#allocation8 + $0x20] sm:$0xf]
        %v675 = vld [vmem:[#allocation8 + $0x24] sm:$0xf]
        %v676 = vld [vmem:[#allocation8 + $0x28] sm:$0xf]
        %v677 = vld [vmem:[#allocation8 + $0x2c] sm:$0xf]
        %v678 = vld [vmem:[#allocation8 + $0x30] sm:$0xf]
        %v679 = vld [vmem:[#allocation8 + $0x34] sm:$0xf]
        %v680 = vld [vmem:[#allocation8 + $0x38] sm:$0xf]
        %v681 = vld [vmem:[#allocation8 + $0x3c] sm:$0xf]
        %v682 = vld [vmem:[#allocation8 + $0x40] sm:$0xf]
        %v683 = vld [vmem:[#allocation8 + $0x44] sm:$0xf]
        %v684 = vld [vmem:[#allocation8 + $0x48] sm:$0xf]
        %v685 = vld [vmem:[#allocation8 + $0x4c] sm:$0xf]
        %v686 = vld [vmem:[#allocation8 + $0x50] sm:$0xf]
        %v687 = vld [vmem:[#allocation8 + $0x54] sm:$0xf]
        %v688 = vld [vmem:[#allocation8 + $0x58] sm:$0xf]
        %v689 = vld [vmem:[#allocation8 + $0x5c] sm:$0xf]
        %v690 = vld [vmem:[#allocation8 + $0x60] sm:$0xf]
        %v691 = vld [vmem:[#allocation8 + $0x64] sm:$0xf]
        %v692 = vld [vmem:[#allocation8 + $0x68] sm:$0xf]
        %v693 = vld [vmem:[#allocation8 + $0x6c] sm:$0xf]
        %v694 = vld [vmem:[#allocation8 + $0x70] sm:$0xf]
        %v695 = vld [vmem:[#allocation8 + $0x74] sm:$0xf]
        %v696 = vld [vmem:[#allocation8 + $0x78] sm:$0xf]
        %v697 = vld [vmem:[#allocation8 + $0x7c] sm:$0xf]
        %v698 = vld [vmem:[#allocation8 + $0x80] sm:$0xf]
        %v699 = vld [vmem:[#allocation8 + $0x84] sm:$0xf]
        %v700 = vld [vmem:[#allocation8 + $0x88] sm:$0xf]
        %v701 = vld [vmem:[#allocation8 + $0x8c] sm:$0xf]
        %v702 = vld [vmem:[#allocation8 + $0x90] sm:$0xf]
        %v703 = vld [vmem:[#allocation8 + $0x94] sm:$0xf]
        %v704 = vld [vmem:[#allocation8 + $0x98] sm:$0xf]
        %v705 = vld [vmem:[#allocation8 + $0x9c] sm:$0xf]
        %v706 = vld [vmem:[#allocation8 + $0xa0] sm:$0xf]
        %v707 = vld [vmem:[#allocation8 + $0xa4] sm:$0xf]
        %v708 = vld [vmem:[#allocation8 + $0xa8] sm:$0xf]
        %v709 = vld [vmem:[#allocation8 + $0xac] sm:$0xf]
        %v710 = vld [vmem:[#allocation8 + $0xb0] sm:$0xf]
        %v711 = vld [vmem:[#allocation8 + $0xb4] sm:$0xf]
        %v712 = vld [vmem:[#allocation8 + $0xb8] sm:$0xf]
        %v713 = vld [vmem:[#allocation8 + $0xbc] sm:$0xf]
        %v714 = vld [vmem:[%s580] sm:$0xff]
        %v715 = vld [vmem:[%s580 + $0x8] sm:$0xf]
        %v716 = vld [vmem:[%s580 + $0xc] sm:$0xff]
        %v717 = vld [vmem:[%s580 + $0x14] sm:$0xf]
        %v718 = vld [vmem:[%s580 + $0x18] sm:$0xff]
        %v719 = vld [vmem:[%s580 + $0x20] sm:$0xf]
        %v720 = vld [vmem:[%s580 + $0x24] sm:$0xff]
        %v721 = vld [vmem:[%s580 + $0x2c] sm:$0xf]
        %v722 = vld [vmem:[%s580 + $0x30] sm:$0xff]
        %v723 = vld [vmem:[%s580 + $0x38] sm:$0xf]
        %v724 = vld [vmem:[%s580 + $0x3c] sm:$0xff]
        %v725 = vld [vmem:[%s580 + $0x44] sm:$0xf]
        %v726 = vld [vmem:[%s580 + $0x48] sm:$0xff]
        %v727 = vld [vmem:[%s580 + $0x50] sm:$0xf]
        %v728 = vld [vmem:[%s580 + $0x54] sm:$0xff]
        %v729 = vld [vmem:[%s580 + $0x5c] sm:$0xf]
        %s730 = scalar_lea.vmem [#allocation8], 192
        %v731 = vld [vmem:[%s730] sm:$0xf]
        %v732 = vld [vmem:[%s730 + $0x4] sm:$0xf]
        %v733 = vld [vmem:[%s730 + $0x8] sm:$0xf]
        %v734 = vld [vmem:[%s730 + $0xc] sm:$0xf]
        %v735 = vld [vmem:[%s730 + $0x10] sm:$0xf]
        %v736 = vld [vmem:[%s730 + $0x14] sm:$0xf]
        %v737 = vld [vmem:[%s730 + $0x18] sm:$0xf]
        %v738 = vld [vmem:[%s730 + $0x1c] sm:$0xf]
        %v739 = vld [vmem:[%s730 + $0x20] sm:$0xf]
        %v740 = vld [vmem:[%s730 + $0x24] sm:$0xf]
        %v741 = vld [vmem:[%s730 + $0x28] sm:$0xf]
        %v742 = vld [vmem:[%s730 + $0x2c] sm:$0xf]
        %v743 = vld [vmem:[%s730 + $0x30] sm:$0xf]
        %v744 = vld [vmem:[%s730 + $0x34] sm:$0xf]
        %v745 = vld [vmem:[%s730 + $0x38] sm:$0xf]
        %v746 = vld [vmem:[%s730 + $0x3c] sm:$0xf]
        %v747 = vld [vmem:[%s730 + $0x40] sm:$0xf]
        %v748 = vld [vmem:[%s730 + $0x44] sm:$0xf]
        %v749 = vld [vmem:[%s730 + $0x48] sm:$0xf]
        %v750 = vld [vmem:[%s730 + $0x4c] sm:$0xf]
        %v751 = vld [vmem:[%s730 + $0x50] sm:$0xf]
        %v752 = vld [vmem:[%s730 + $0x54] sm:$0xf]
        %v753 = vld [vmem:[%s730 + $0x58] sm:$0xf]
        %v754 = vld [vmem:[%s730 + $0x5c] sm:$0xf]
        %v755 = vld [vmem:[%s730 + $0x60] sm:$0xf]
        %v756 = vld [vmem:[%s730 + $0x64] sm:$0xf]
        %v757 = vld [vmem:[%s730 + $0x68] sm:$0xf]
        %v758 = vld [vmem:[%s730 + $0x6c] sm:$0xf]
        %v759 = vld [vmem:[%s730 + $0x70] sm:$0xf]
        %v760 = vld [vmem:[%s730 + $0x74] sm:$0xf]
        %v761 = vld [vmem:[%s730 + $0x78] sm:$0xf]
        %v762 = vld [vmem:[%s730 + $0x7c] sm:$0xf]
        %v763 = vld [vmem:[%s730 + $0x80] sm:$0xf]
        %v764 = vld [vmem:[%s730 + $0x84] sm:$0xf]
        %v765 = vld [vmem:[%s730 + $0x88] sm:$0xf]
        %v766 = vld [vmem:[%s730 + $0x8c] sm:$0xf]
        %v767 = vld [vmem:[%s730 + $0x90] sm:$0xf]
        %v768 = vld [vmem:[%s730 + $0x94] sm:$0xf]
        %v769 = vld [vmem:[%s730 + $0x98] sm:$0xf]
        %v770 = vld [vmem:[%s730 + $0x9c] sm:$0xf]
        %v771 = vld [vmem:[%s730 + $0xa0] sm:$0xf]
        %v772 = vld [vmem:[%s730 + $0xa4] sm:$0xf]
        %v773 = vld [vmem:[%s730 + $0xa8] sm:$0xf]
        %v774 = vld [vmem:[%s730 + $0xac] sm:$0xf]
        %v775 = vld [vmem:[%s730 + $0xb0] sm:$0xf]
        %v776 = vld [vmem:[%s730 + $0xb4] sm:$0xf]
        %v777 = vld [vmem:[%s730 + $0xb8] sm:$0xf]
        %v778 = vld [vmem:[%s730 + $0xbc] sm:$0xf]
        %v795 = vunpack.c.l.b16 %v714
        %v796 = vunpack.c.h.b16 %v714
        %v797 = vunpack.c.l.b16 %v715
        %v798 = vunpack.c.l.b16 %v716
        %v799 = vunpack.c.h.b16 %v716
        %v800 = vunpack.c.l.b16 %v717
        %v801 = vunpack.c.l.b16 %v718
        %v802 = vunpack.c.h.b16 %v718
        %v803 = vunpack.c.l.b16 %v719
        %v804 = vunpack.c.l.b16 %v720
        %v805 = vunpack.c.h.b16 %v720
        %v806 = vunpack.c.l.b16 %v721
        %v807 = vunpack.c.l.b16 %v722
        %v808 = vunpack.c.h.b16 %v722
        %v809 = vunpack.c.l.b16 %v723
        %v810 = vunpack.c.l.b16 %v724
        %v811 = vunpack.c.h.b16 %v724
        %v812 = vunpack.c.l.b16 %v725
        %v813 = vunpack.c.l.b16 %v726
        %v814 = vunpack.c.h.b16 %v726
        %v815 = vunpack.c.l.b16 %v727
        %v816 = vunpack.c.l.b16 %v728
        %v817 = vunpack.c.h.b16 %v728
        %v818 = vunpack.c.l.b16 %v729
        %v819 = vpack.c.b16 %v798, %v795
        %v820 = vpack.c.b16 %v799, %v796
        %v821 = vpack.c.b16 %v800, %v797
        %v822 = vpack.c.b16 %v804, %v801
        %v823 = vpack.c.b16 %v805, %v802
        %v824 = vpack.c.b16 %v806, %v803
        %v825 = vpack.c.b16 %v810, %v807
        %v826 = vpack.c.b16 %v811, %v808
        %v827 = vpack.c.b16 %v812, %v809
        %v828 = vpack.c.b16 %v816, %v813
        %v829 = vpack.c.b16 %v817, %v814
        %v830 = vpack.c.b16 %v818, %v815
        %v891 = vunpack.c.l.b16 %v731
        %v892 = vunpack.c.l.b16 %v732
        %v893 = vunpack.c.l.b16 %v733
        %v894 = vunpack.c.l.b16 %v734
        %v895 = vunpack.c.l.b16 %v735
        %v896 = vunpack.c.l.b16 %v736
        %v897 = vunpack.c.l.b16 %v737
        %v898 = vunpack.c.l.b16 %v738
        %v899 = vunpack.c.l.b16 %v739
        %v900 = vunpack.c.l.b16 %v740
        %v901 = vunpack.c.l.b16 %v741
        %v902 = vunpack.c.l.b16 %v742
        %v903 = vunpack.c.l.b16 %v743
        %v904 = vunpack.c.l.b16 %v744
        %v905 = vunpack.c.l.b16 %v745
        %v906 = vunpack.c.l.b16 %v746
        %v907 = vunpack.c.l.b16 %v747
        %v908 = vunpack.c.l.b16 %v748
        %v909 = vunpack.c.l.b16 %v749
        %v910 = vunpack.c.l.b16 %v750
        %v911 = vunpack.c.l.b16 %v751
        %v912 = vunpack.c.l.b16 %v752
        %v913 = vunpack.c.l.b16 %v753
        %v914 = vunpack.c.l.b16 %v754
        %v915 = vunpack.c.l.b16 %v755
        %v916 = vunpack.c.l.b16 %v756
        %v917 = vunpack.c.l.b16 %v757
        %v918 = vunpack.c.l.b16 %v758
        %v919 = vunpack.c.l.b16 %v759
        %v920 = vunpack.c.l.b16 %v760
        %v921 = vunpack.c.l.b16 %v761
        %v922 = vunpack.c.l.b16 %v762
        %v923 = vunpack.c.l.b16 %v763
        %v924 = vunpack.c.l.b16 %v764
        %v925 = vunpack.c.l.b16 %v765
        %v926 = vunpack.c.l.b16 %v766
        %v927 = vunpack.c.l.b16 %v767
        %v928 = vunpack.c.l.b16 %v768
        %v929 = vunpack.c.l.b16 %v769
        %v930 = vunpack.c.l.b16 %v770
        %v931 = vunpack.c.l.b16 %v771
        %v932 = vunpack.c.l.b16 %v772
        %v933 = vunpack.c.l.b16 %v773
        %v934 = vunpack.c.l.b16 %v774
        %v935 = vunpack.c.l.b16 %v775
        %v936 = vunpack.c.l.b16 %v776
        %v937 = vunpack.c.l.b16 %v777
        %v938 = vunpack.c.l.b16 %v778
        %v939 = vpack.c.b16 %v892, %v891
        %v940 = vpack.c.b16 %v894, %v893
        %v941 = vpack.c.b16 %v896, %v895
        %v942 = vpack.c.b16 %v898, %v897
        %v943 = vpack.c.b16 %v900, %v899
        %v944 = vpack.c.b16 %v902, %v901
        %v945 = vpack.c.b16 %v904, %v903
        %v946 = vpack.c.b16 %v906, %v905
        %v947 = vpack.c.b16 %v908, %v907
        %v948 = vpack.c.b16 %v910, %v909
        %v949 = vpack.c.b16 %v912, %v911
        %v950 = vpack.c.b16 %v914, %v913
        %v951 = vpack.c.b16 %v916, %v915
        %v952 = vpack.c.b16 %v918, %v917
        %v953 = vpack.c.b16 %v920, %v919
        %v954 = vpack.c.b16 %v922, %v921
        %v955 = vpack.c.b16 %v924, %v923
        %v956 = vpack.c.b16 %v926, %v925
        %v957 = vpack.c.b16 %v928, %v927
        %v958 = vpack.c.b16 %v930, %v929
        %v959 = vpack.c.b16 %v932, %v931
        %v960 = vpack.c.b16 %v934, %v933
        %v961 = vpack.c.b16 %v936, %v935
        %v962 = vpack.c.b16 %v938, %v937
        %987 = vmatprep.subr.bf16.mxu0 0
        %988 = vmatpush1.bf16.msra.mxu0 %v946
        %989 = vmatprep.subr.bf16.mxu0 0
        %990 = vmatpush1.bf16.msra.mxu0 %v945
        %991 = vmatprep.subr.bf16.mxu0 0
        %992 = vmatpush1.bf16.msra.mxu0 %v944
        %993 = vmatprep.subr.bf16.mxu0 0
        %994 = vmatpush1.bf16.msra.mxu0 %v943
        %995 = vmatprep.subr.bf16.mxu0 0
        %996 = vmatpush1.bf16.msra.mxu0 %v942
        %997 = vmatprep.subr.bf16.mxu0 0
        %998 = vmatpush1.bf16.msra.mxu0 %v941
        %999 = vmatprep.subr.bf16.mxu0 0
        %1000 = vmatpush1.bf16.msra.mxu0 %v940
        %1001 = vmatprep.subr.bf16.mxu0 0
        %1002 = vmatpush1.bf16.msra.mxu0 %v939
        %1003 = vmatprep.subr.bf16.mxu0 0
        %1004 = vmatpush2.bf16.msra.mxu0 %v954
        %1005 = vmatprep.subr.bf16.mxu0 0
        %1006 = vmatpush2.bf16.msra.mxu0 %v953
        %1007 = vmatprep.subr.bf16.mxu0 0
        %1008 = vmatpush2.bf16.msra.mxu0 %v952
        %1009 = vmatprep.subr.bf16.mxu0 0
        %1010 = vmatpush2.bf16.msra.mxu0 %v951
        %1011 = vmatprep.subr.bf16.mxu0 0
        %1012 = vmatpush2.bf16.msra.mxu0 %v950
        %1013 = vmatprep.subr.bf16.mxu0 0
        %1014 = vmatpush2.bf16.msra.mxu0 %v949
        %1015 = vmatprep.subr.bf16.mxu0 0
        %1016 = vmatpush2.bf16.msra.mxu0 %v948
        %1017 = vmatprep.subr.bf16.mxu0 0
        %1018 = vmatpush2.bf16.msra.mxu0 %v947
        %1019 = vmatprep.mubr.bf16.mxu0 %v820
        %1020 = vmatmul.mubr.bf16.gmra.mxu0 %v819
        %v1021 = vpop.f32.mrf.mxu0
        %v1022 = vadd.f32 0.0, %v1021
        %v1023 = vpop.f32.mrf.mxu0
        %v1024 = vpop.f32.mrf.mxu0
        %v1025 = vadd.f32 0.0, %v1024
        %v1026 = vpop.f32.mrf.mxu0
        %1027 = vmatprep.mubr.bf16.mxu0 %v823
        %1028 = vmatmul.mubr.bf16.gmra.mxu0 %v822
        %v1029 = vpop.f32.mrf.mxu0
        %v1030 = vadd.f32 0.0, %v1029
        %v1031 = vpop.f32.mrf.mxu0
        %v1032 = vpop.f32.mrf.mxu0
        %v1033 = vadd.f32 0.0, %v1032
        %v1034 = vpop.f32.mrf.mxu0
        %1035 = vmatprep.mubr.bf16.mxu0 %v826
        %1036 = vmatmul.mubr.bf16.gmra.mxu0 %v825
        %v1037 = vpop.f32.mrf.mxu0
        %v1038 = vadd.f32 0.0, %v1037
        %v1039 = vpop.f32.mrf.mxu0
        %v1040 = vpop.f32.mrf.mxu0
        %v1041 = vadd.f32 0.0, %v1040
        %v1042 = vpop.f32.mrf.mxu0
        %1043 = vmatprep.mubr.bf16.mxu0 %v829
        %1044 = vmatmul.mubr.bf16.gmra.mxu0 %v828
        %v1045 = vpop.f32.mrf.mxu0
        %v1046 = vadd.f32 0.0, %v1045
        %v1047 = vpop.f32.mrf.mxu0
        %v1048 = vpop.f32.mrf.mxu0
        %v1049 = vadd.f32 0.0, %v1048
        %v1050 = vpop.f32.mrf.mxu0
        %1051 = vdwg.mxu0
        %1052 = vmatprep.subr.bf16.mxu0 0
        %1053 = vmatpush1.bf16.msra.mxu0 %v962
        %1054 = vmatprep.subr.bf16.mxu0 0
        %1055 = vmatpush1.bf16.msra.mxu0 %v961
        %1056 = vmatprep.subr.bf16.mxu0 0
        %1057 = vmatpush1.bf16.msra.mxu0 %v960
        %1058 = vmatprep.subr.bf16.mxu0 0
        %1059 = vmatpush1.bf16.msra.mxu0 %v959
        %1060 = vmatprep.subr.bf16.mxu0 0
        %1061 = vmatpush1.bf16.msra.mxu0 %v958
        %1062 = vmatprep.subr.bf16.mxu0 0
        %1063 = vmatpush1.bf16.msra.mxu0 %v957
        %1064 = vmatprep.subr.bf16.mxu0 0
        %1065 = vmatpush1.bf16.msra.mxu0 %v956
        %1066 = vmatprep.subr.bf16.mxu0 0
        %1067 = vmatpush1.bf16.msra.mxu0 %v955
        %1068 = vmatprep.subr.bf16.mxu0 0
        %1069 = vmatpush2.bf16.msra.mxu0 0
        %1070 = vmatprep.subr.bf16.mxu0 0
        %1071 = vmatpush2.bf16.msra.mxu0 0
        %1072 = vmatprep.subr.bf16.mxu0 0
        %1073 = vmatpush2.bf16.msra.mxu0 0
        %1074 = vmatprep.subr.bf16.mxu0 0
        %1075 = vmatpush2.bf16.msra.mxu0 0
        %1076 = vmatprep.subr.bf16.mxu0 0
        %1077 = vmatpush2.bf16.msra.mxu0 0
        %1078 = vmatprep.subr.bf16.mxu0 0
        %1079 = vmatpush2.bf16.msra.mxu0 0
        %1080 = vmatprep.subr.bf16.mxu0 0
        %1081 = vmatpush2.bf16.msra.mxu0 0
        %1082 = vmatprep.subr.bf16.mxu0 0
        %1083 = vmatpush2.bf16.msra.mxu0 0
        %1084 = vmatprep.mubr.bf16.mxu0 0
        %1085 = vmatmul.mubr.bf16.gmra.mxu0 %v821
        %v1086 = vpop.f32.mrf.mxu0
        %v1087 = vadd.f32 %v1022, %v1086
        %v1088 = vpop.f32.mrf.mxu0
        %v1089 = vpop.f32.mrf.mxu0
        %v1090 = vadd.f32 %v1025, %v1089
        %v1091 = vpop.f32.mrf.mxu0
        %1092 = vmatprep.mubr.bf16.mxu0 0
        %1093 = vmatmul.mubr.bf16.gmra.mxu0 %v824
        %v1094 = vpop.f32.mrf.mxu0
        %v1095 = vadd.f32 %v1030, %v1094
        %v1096 = vpop.f32.mrf.mxu0
        %v1097 = vpop.f32.mrf.mxu0
        %v1098 = vadd.f32 %v1033, %v1097
        %v1099 = vpop.f32.mrf.mxu0
        %1100 = vmatprep.mubr.bf16.mxu0 0
        %1101 = vmatmul.mubr.bf16.gmra.mxu0 %v827
        %v1102 = vpop.f32.mrf.mxu0
        %v1103 = vadd.f32 %v1038, %v1102
        %v1104 = vpop.f32.mrf.mxu0
        %v1105 = vpop.f32.mrf.mxu0
        %v1106 = vadd.f32 %v1041, %v1105
        %v1107 = vpop.f32.mrf.mxu0
        %1108 = vmatprep.mubr.bf16.mxu0 0
        %1109 = vmatmul.mubr.bf16.gmra.mxu0 %v830
        %v1110 = vpop.f32.mrf.mxu0
        %v1111 = vadd.f32 %v1046, %v1110
        %v1112 = vpop.f32.mrf.mxu0
        %v1113 = vpop.f32.mrf.mxu0
        %v1114 = vadd.f32 %v1049, %v1113
        %v1115 = vpop.f32.mrf.mxu0
        %1116 = vdwg.mxu0
        %v1133 = vunpack.c.l.b16 %v650
        %v1134 = vunpack.c.h.b16 %v650
        %v1135 = vunpack.c.l.b16 %v651
        %v1136 = vunpack.c.l.b16 %v652
        %v1137 = vunpack.c.h.b16 %v652
        %v1138 = vunpack.c.l.b16 %v653
        %v1139 = vunpack.c.l.b16 %v654
        %v1140 = vunpack.c.h.b16 %v654
        %v1141 = vunpack.c.l.b16 %v655
        %v1142 = vunpack.c.l.b16 %v656
        %v1143 = vunpack.c.h.b16 %v656
        %v1144 = vunpack.c.l.b16 %v657
        %v1145 = vunpack.c.l.b16 %v658
        %v1146 = vunpack.c.h.b16 %v658
        %v1147 = vunpack.c.l.b16 %v659
        %v1148 = vunpack.c.l.b16 %v660
        %v1149 = vunpack.c.h.b16 %v660
        %v1150 = vunpack.c.l.b16 %v661
        %v1151 = vunpack.c.l.b16 %v662
        %v1152 = vunpack.c.h.b16 %v662
        %v1153 = vunpack.c.l.b16 %v663
        %v1154 = vunpack.c.l.b16 %v664
        %v1155 = vunpack.c.h.b16 %v664
        %v1156 = vunpack.c.l.b16 %v665
        %v1157 = vpack.c.b16 %v1136, %v1133
        %v1158 = vpack.c.b16 %v1137, %v1134
        %v1159 = vpack.c.b16 %v1138, %v1135
        %v1160 = vpack.c.b16 %v1142, %v1139
        %v1161 = vpack.c.b16 %v1143, %v1140
        %v1162 = vpack.c.b16 %v1144, %v1141
        %v1163 = vpack.c.b16 %v1148, %v1145
        %v1164 = vpack.c.b16 %v1149, %v1146
        %v1165 = vpack.c.b16 %v1150, %v1147
        %v1166 = vpack.c.b16 %v1154, %v1151
        %v1167 = vpack.c.b16 %v1155, %v1152
        %v1168 = vpack.c.b16 %v1156, %v1153
        %v1229 = vunpack.c.l.b16 %v666
        %v1230 = vunpack.c.l.b16 %v667
        %v1231 = vunpack.c.l.b16 %v668
        %v1232 = vunpack.c.l.b16 %v669
        %v1233 = vunpack.c.l.b16 %v670
        %v1234 = vunpack.c.l.b16 %v671
        %v1235 = vunpack.c.l.b16 %v672
        %v1236 = vunpack.c.l.b16 %v673
        %v1237 = vunpack.c.l.b16 %v674
        %v1238 = vunpack.c.l.b16 %v675
        %v1239 = vunpack.c.l.b16 %v676
        %v1240 = vunpack.c.l.b16 %v677
        %v1241 = vunpack.c.l.b16 %v678
        %v1242 = vunpack.c.l.b16 %v679
        %v1243 = vunpack.c.l.b16 %v680
        %v1244 = vunpack.c.l.b16 %v681
        %v1245 = vunpack.c.l.b16 %v682
        %v1246 = vunpack.c.l.b16 %v683
        %v1247 = vunpack.c.l.b16 %v684
        %v1248 = vunpack.c.l.b16 %v685
        %v1249 = vunpack.c.l.b16 %v686
        %v1250 = vunpack.c.l.b16 %v687
        %v1251 = vunpack.c.l.b16 %v688
        %v1252 = vunpack.c.l.b16 %v689
        %v1253 = vunpack.c.l.b16 %v690
        %v1254 = vunpack.c.l.b16 %v691
        %v1255 = vunpack.c.l.b16 %v692
        %v1256 = vunpack.c.l.b16 %v693
        %v1257 = vunpack.c.l.b16 %v694
        %v1258 = vunpack.c.l.b16 %v695
        %v1259 = vunpack.c.l.b16 %v696
        %v1260 = vunpack.c.l.b16 %v697
        %v1261 = vunpack.c.l.b16 %v698
        %v1262 = vunpack.c.l.b16 %v699
        %v1263 = vunpack.c.l.b16 %v700
        %v1264 = vunpack.c.l.b16 %v701
        %v1265 = vunpack.c.l.b16 %v702
        %v1266 = vunpack.c.l.b16 %v703
        %v1267 = vunpack.c.l.b16 %v704
        %v1268 = vunpack.c.l.b16 %v705
        %v1269 = vunpack.c.l.b16 %v706
        %v1270 = vunpack.c.l.b16 %v707
        %v1271 = vunpack.c.l.b16 %v708
        %v1272 = vunpack.c.l.b16 %v709
        %v1273 = vunpack.c.l.b16 %v710
        %v1274 = vunpack.c.l.b16 %v711
        %v1275 = vunpack.c.l.b16 %v712
        %v1276 = vunpack.c.l.b16 %v713
        %v1277 = vpack.c.b16 %v1230, %v1229
        %v1278 = vpack.c.b16 %v1232, %v1231
        %v1279 = vpack.c.b16 %v1234, %v1233
        %v1280 = vpack.c.b16 %v1236, %v1235
        %v1281 = vpack.c.b16 %v1238, %v1237
        %v1282 = vpack.c.b16 %v1240, %v1239
        %v1283 = vpack.c.b16 %v1242, %v1241
        %v1284 = vpack.c.b16 %v1244, %v1243
        %v1285 = vpack.c.b16 %v1246, %v1245
        %v1286 = vpack.c.b16 %v1248, %v1247
        %v1287 = vpack.c.b16 %v1250, %v1249
        %v1288 = vpack.c.b16 %v1252, %v1251
        %v1289 = vpack.c.b16 %v1254, %v1253
        %v1290 = vpack.c.b16 %v1256, %v1255
        %v1291 = vpack.c.b16 %v1258, %v1257
        %v1292 = vpack.c.b16 %v1260, %v1259
        %v1293 = vpack.c.b16 %v1262, %v1261
        %v1294 = vpack.c.b16 %v1264, %v1263
        %v1295 = vpack.c.b16 %v1266, %v1265
        %v1296 = vpack.c.b16 %v1268, %v1267
        %v1297 = vpack.c.b16 %v1270, %v1269
        %v1298 = vpack.c.b16 %v1272, %v1271
        %v1299 = vpack.c.b16 %v1274, %v1273
        %v1300 = vpack.c.b16 %v1276, %v1275
        %1325 = vmatprep.subr.bf16.mxu0 0
        %1326 = vmatpush1.bf16.msra.mxu0 %v1284
        %1327 = vmatprep.subr.bf16.mxu0 0
        %1328 = vmatpush1.bf16.msra.mxu0 %v1283
        %1329 = vmatprep.subr.bf16.mxu0 0
        %1330 = vmatpush1.bf16.msra.mxu0 %v1282
        %1331 = vmatprep.subr.bf16.mxu0 0
        %1332 = vmatpush1.bf16.msra.mxu0 %v1281
        %1333 = vmatprep.subr.bf16.mxu0 0
        %1334 = vmatpush1.bf16.msra.mxu0 %v1280
        %1335 = vmatprep.subr.bf16.mxu0 0
        %1336 = vmatpush1.bf16.msra.mxu0 %v1279
        %1337 = vmatprep.subr.bf16.mxu0 0
        %1338 = vmatpush1.bf16.msra.mxu0 %v1278
        %1339 = vmatprep.subr.bf16.mxu0 0
        %1340 = vmatpush1.bf16.msra.mxu0 %v1277
        %1341 = vmatprep.subr.bf16.mxu0 0
        %1342 = vmatpush2.bf16.msra.mxu0 %v1292
        %1343 = vmatprep.subr.bf16.mxu0 0
        %1344 = vmatpush2.bf16.msra.mxu0 %v1291
        %1345 = vmatprep.subr.bf16.mxu0 0
        %1346 = vmatpush2.bf16.msra.mxu0 %v1290
        %1347 = vmatprep.subr.bf16.mxu0 0
        %1348 = vmatpush2.bf16.msra.mxu0 %v1289
        %1349 = vmatprep.subr.bf16.mxu0 0
        %1350 = vmatpush2.bf16.msra.mxu0 %v1288
        %1351 = vmatprep.subr.bf16.mxu0 0
        %1352 = vmatpush2.bf16.msra.mxu0 %v1287
        %1353 = vmatprep.subr.bf16.mxu0 0
        %1354 = vmatpush2.bf16.msra.mxu0 %v1286
        %1355 = vmatprep.subr.bf16.mxu0 0
        %1356 = vmatpush2.bf16.msra.mxu0 %v1285
        %1357 = vmatprep.mubr.bf16.mxu0 %v1158
        %1358 = vmatmul.mubr.bf16.gmra.mxu0 %v1157
        %v1359 = vpop.f32.mrf.mxu0
        %v1360 = vadd.f32 %v1087, %v1359
        %v1361 = vpop.f32.mrf.mxu0
        %v1362 = vpop.f32.mrf.mxu0
        %v1363 = vadd.f32 %v1090, %v1362
        %v1364 = vpop.f32.mrf.mxu0
        %1365 = vmatprep.mubr.bf16.mxu0 %v1161
        %1366 = vmatmul.mubr.bf16.gmra.mxu0 %v1160
        %v1367 = vpop.f32.mrf.mxu0
        %v1368 = vadd.f32 %v1095, %v1367
        %v1369 = vpop.f32.mrf.mxu0
        %v1370 = vpop.f32.mrf.mxu0
        %v1371 = vadd.f32 %v1098, %v1370
        %v1372 = vpop.f32.mrf.mxu0
        %1373 = vmatprep.mubr.bf16.mxu0 %v1164
        %1374 = vmatmul.mubr.bf16.gmra.mxu0 %v1163
        %v1375 = vpop.f32.mrf.mxu0
        %v1376 = vadd.f32 %v1103, %v1375
        %v1377 = vpop.f32.mrf.mxu0
        %v1378 = vpop.f32.mrf.mxu0
        %v1379 = vadd.f32 %v1106, %v1378
        %v1380 = vpop.f32.mrf.mxu0
        %1381 = vmatprep.mubr.bf16.mxu0 %v1167
        %1382 = vmatmul.mubr.bf16.gmra.mxu0 %v1166
        %v1383 = vpop.f32.mrf.mxu0
        %v1384 = vadd.f32 %v1111, %v1383
        %v1385 = vpop.f32.mrf.mxu0
        %v1386 = vpop.f32.mrf.mxu0
        %v1387 = vadd.f32 %v1114, %v1386
        %v1388 = vpop.f32.mrf.mxu0
        %1389 = vdwg.mxu0
        %1390 = vmatprep.subr.bf16.mxu0 0
        %1391 = vmatpush1.bf16.msra.mxu0 %v1300
        %1392 = vmatprep.subr.bf16.mxu0 0
        %1393 = vmatpush1.bf16.msra.mxu0 %v1299
        %1394 = vmatprep.subr.bf16.mxu0 0
        %1395 = vmatpush1.bf16.msra.mxu0 %v1298
        %1396 = vmatprep.subr.bf16.mxu0 0
        %1397 = vmatpush1.bf16.msra.mxu0 %v1297
        %1398 = vmatprep.subr.bf16.mxu0 0
        %1399 = vmatpush1.bf16.msra.mxu0 %v1296
        %1400 = vmatprep.subr.bf16.mxu0 0
        %1401 = vmatpush1.bf16.msra.mxu0 %v1295
        %1402 = vmatprep.subr.bf16.mxu0 0
        %1403 = vmatpush1.bf16.msra.mxu0 %v1294
        %1404 = vmatprep.subr.bf16.mxu0 0
        %1405 = vmatpush1.bf16.msra.mxu0 %v1293
        %1406 = vmatprep.subr.bf16.mxu0 0
        %1407 = vmatpush2.bf16.msra.mxu0 0
        %1408 = vmatprep.subr.bf16.mxu0 0
        %1409 = vmatpush2.bf16.msra.mxu0 0
        %1410 = vmatprep.subr.bf16.mxu0 0
        %1411 = vmatpush2.bf16.msra.mxu0 0
        %1412 = vmatprep.subr.bf16.mxu0 0
        %1413 = vmatpush2.bf16.msra.mxu0 0
        %1414 = vmatprep.subr.bf16.mxu0 0
        %1415 = vmatpush2.bf16.msra.mxu0 0
        %1416 = vmatprep.subr.bf16.mxu0 0
        %1417 = vmatpush2.bf16.msra.mxu0 0
        %1418 = vmatprep.subr.bf16.mxu0 0
        %1419 = vmatpush2.bf16.msra.mxu0 0
        %1420 = vmatprep.subr.bf16.mxu0 0
        %1421 = vmatpush2.bf16.msra.mxu0 0
        %1422 = vmatprep.mubr.bf16.mxu0 0
        %1423 = vmatmul.mubr.bf16.gmra.mxu0 %v1159
        %v1424 = vpop.f32.mrf.mxu0
        %v1425 = vadd.f32 %v1360, %v1424
        %v1426 = vpop.f32.mrf.mxu0
        %v1427 = vpop.f32.mrf.mxu0
        %v1428 = vadd.f32 %v1363, %v1427
        %v1429 = vpop.f32.mrf.mxu0
        %1430 = vmatprep.mubr.bf16.mxu0 0
        %1431 = vmatmul.mubr.bf16.gmra.mxu0 %v1162
        %v1432 = vpop.f32.mrf.mxu0
        %v1433 = vadd.f32 %v1368, %v1432
        %v1434 = vpop.f32.mrf.mxu0
        %v1435 = vpop.f32.mrf.mxu0
        %v1436 = vadd.f32 %v1371, %v1435
        %v1437 = vpop.f32.mrf.mxu0
        %1438 = vmatprep.mubr.bf16.mxu0 0
        %1439 = vmatmul.mubr.bf16.gmra.mxu0 %v1165
        %v1440 = vpop.f32.mrf.mxu0
        %v1441 = vadd.f32 %v1376, %v1440
        %v1442 = vpop.f32.mrf.mxu0
        %v1443 = vpop.f32.mrf.mxu0
        %v1444 = vadd.f32 %v1379, %v1443
        %v1445 = vpop.f32.mrf.mxu0
        %1446 = vmatprep.mubr.bf16.mxu0 0
        %1447 = vmatmul.mubr.bf16.gmra.mxu0 %v1168
        %v1448 = vpop.f32.mrf.mxu0
        %v1449 = vadd.f32 %v1384, %v1448
        %v1450 = vpop.f32.mrf.mxu0
        %v1451 = vpop.f32.mrf.mxu0
        %v1452 = vadd.f32 %v1387, %v1451
        %v1453 = vpop.f32.mrf.mxu0
        %1454 = vdwg.mxu0
        %s1455 = scalar_lea.vmem [#allocation2], 24
        %v1456 = vld [vmem:[%s1455] sm:$0xff]
        %v1457 = vld [vmem:[%s1455 + $0x8] sm:$0xf]
        %v1458 = vld [vmem:[%s1455 + $0xc] sm:$0xff]
        %v1459 = vld [vmem:[%s1455 + $0x14] sm:$0xf]
        %v1460 = vld [vmem:[%s1455 + $0x18] sm:$0xff]
        %v1461 = vld [vmem:[%s1455 + $0x20] sm:$0xf]
        %v1462 = vld [vmem:[%s1455 + $0x24] sm:$0xff]
        %v1463 = vld [vmem:[%s1455 + $0x2c] sm:$0xf]
        %v1464 = vld [vmem:[%s1455 + $0x30] sm:$0xff]
        %v1465 = vld [vmem:[%s1455 + $0x38] sm:$0xf]
        %v1466 = vld [vmem:[%s1455 + $0x3c] sm:$0xff]
        %v1467 = vld [vmem:[%s1455 + $0x44] sm:$0xf]
        %v1468 = vld [vmem:[%s1455 + $0x48] sm:$0xff]
        %v1469 = vld [vmem:[%s1455 + $0x50] sm:$0xf]
        %v1470 = vld [vmem:[%s1455 + $0x54] sm:$0xff]
        %v1471 = vld [vmem:[%s1455 + $0x5c] sm:$0xf]
        %s1472 = scalar_lea.vmem [#allocation8], 384
        %v1473 = vld [vmem:[%s1472] sm:$0xf]
        %v1474 = vld [vmem:[%s1472 + $0x4] sm:$0xf]
        %v1475 = vld [vmem:[%s1472 + $0x8] sm:$0xf]
        %v1476 = vld [vmem:[%s1472 + $0xc] sm:$0xf]
        %v1477 = vld [vmem:[%s1472 + $0x10] sm:$0xf]
        %v1478 = vld [vmem:[%s1472 + $0x14] sm:$0xf]
        %v1479 = vld [vmem:[%s1472 + $0x18] sm:$0xf]
        %v1480 = vld [vmem:[%s1472 + $0x1c] sm:$0xf]
        %v1481 = vld [vmem:[%s1472 + $0x20] sm:$0xf]
        %v1482 = vld [vmem:[%s1472 + $0x24] sm:$0xf]
        %v1483 = vld [vmem:[%s1472 + $0x28] sm:$0xf]
        %v1484 = vld [vmem:[%s1472 + $0x2c] sm:$0xf]
        %v1485 = vld [vmem:[%s1472 + $0x30] sm:$0xf]
        %v1486 = vld [vmem:[%s1472 + $0x34] sm:$0xf]
        %v1487 = vld [vmem:[%s1472 + $0x38] sm:$0xf]
        %v1488 = vld [vmem:[%s1472 + $0x3c] sm:$0xf]
        %v1489 = vld [vmem:[%s1472 + $0x40] sm:$0xf]
        %v1490 = vld [vmem:[%s1472 + $0x44] sm:$0xf]
        %v1491 = vld [vmem:[%s1472 + $0x48] sm:$0xf]
        %v1492 = vld [vmem:[%s1472 + $0x4c] sm:$0xf]
        %v1493 = vld [vmem:[%s1472 + $0x50] sm:$0xf]
        %v1494 = vld [vmem:[%s1472 + $0x54] sm:$0xf]
        %v1495 = vld [vmem:[%s1472 + $0x58] sm:$0xf]
        %v1496 = vld [vmem:[%s1472 + $0x5c] sm:$0xf]
        %v1497 = vld [vmem:[%s1472 + $0x60] sm:$0xf]
        %v1498 = vld [vmem:[%s1472 + $0x64] sm:$0xf]
        %v1499 = vld [vmem:[%s1472 + $0x68] sm:$0xf]
        %v1500 = vld [vmem:[%s1472 + $0x6c] sm:$0xf]
        %v1501 = vld [vmem:[%s1472 + $0x70] sm:$0xf]
        %v1502 = vld [vmem:[%s1472 + $0x74] sm:$0xf]
        %v1503 = vld [vmem:[%s1472 + $0x78] sm:$0xf]
        %v1504 = vld [vmem:[%s1472 + $0x7c] sm:$0xf]
        %v1505 = vld [vmem:[%s1472 + $0x80] sm:$0xf]
        %v1506 = vld [vmem:[%s1472 + $0x84] sm:$0xf]
        %v1507 = vld [vmem:[%s1472 + $0x88] sm:$0xf]
        %v1508 = vld [vmem:[%s1472 + $0x8c] sm:$0xf]
        %v1509 = vld [vmem:[%s1472 + $0x90] sm:$0xf]
        %v1510 = vld [vmem:[%s1472 + $0x94] sm:$0xf]
        %v1511 = vld [vmem:[%s1472 + $0x98] sm:$0xf]
        %v1512 = vld [vmem:[%s1472 + $0x9c] sm:$0xf]
        %v1513 = vld [vmem:[%s1472 + $0xa0] sm:$0xf]
        %v1514 = vld [vmem:[%s1472 + $0xa4] sm:$0xf]
        %v1515 = vld [vmem:[%s1472 + $0xa8] sm:$0xf]
        %v1516 = vld [vmem:[%s1472 + $0xac] sm:$0xf]
        %v1517 = vld [vmem:[%s1472 + $0xb0] sm:$0xf]
        %v1518 = vld [vmem:[%s1472 + $0xb4] sm:$0xf]
        %v1519 = vld [vmem:[%s1472 + $0xb8] sm:$0xf]
        %v1520 = vld [vmem:[%s1472 + $0xbc] sm:$0xf]
        %v1537 = vunpack.c.l.b16 %v1456
        %v1538 = vunpack.c.h.b16 %v1456
        %v1539 = vunpack.c.l.b16 %v1457
        %v1540 = vunpack.c.l.b16 %v1458
        %v1541 = vunpack.c.h.b16 %v1458
        %v1542 = vunpack.c.l.b16 %v1459
        %v1543 = vunpack.c.l.b16 %v1460
        %v1544 = vunpack.c.h.b16 %v1460
        %v1545 = vunpack.c.l.b16 %v1461
        %v1546 = vunpack.c.l.b16 %v1462
        %v1547 = vunpack.c.h.b16 %v1462
        %v1548 = vunpack.c.l.b16 %v1463
        %v1549 = vunpack.c.l.b16 %v1464
        %v1550 = vunpack.c.h.b16 %v1464
        %v1551 = vunpack.c.l.b16 %v1465
        %v1552 = vunpack.c.l.b16 %v1466
        %v1553 = vunpack.c.h.b16 %v1466
        %v1554 = vunpack.c.l.b16 %v1467
        %v1555 = vunpack.c.l.b16 %v1468
        %v1556 = vunpack.c.h.b16 %v1468
        %v1557 = vunpack.c.l.b16 %v1469
        %v1558 = vunpack.c.l.b16 %v1470
        %v1559 = vunpack.c.h.b16 %v1470
        %v1560 = vunpack.c.l.b16 %v1471
        %v1561 = vpack.c.b16 %v1540, %v1537
        %v1562 = vpack.c.b16 %v1541, %v1538
        %v1563 = vpack.c.b16 %v1542, %v1539
        %v1564 = vpack.c.b16 %v1546, %v1543
        %v1565 = vpack.c.b16 %v1547, %v1544
        %v1566 = vpack.c.b16 %v1548, %v1545
        %v1567 = vpack.c.b16 %v1552, %v1549
        %v1568 = vpack.c.b16 %v1553, %v1550
        %v1569 = vpack.c.b16 %v1554, %v1551
        %v1570 = vpack.c.b16 %v1558, %v1555
        %v1571 = vpack.c.b16 %v1559, %v1556
        %v1572 = vpack.c.b16 %v1560, %v1557
        %v1633 = vunpack.c.l.b16 %v1473
        %v1634 = vunpack.c.l.b16 %v1474
        %v1635 = vunpack.c.l.b16 %v1475
        %v1636 = vunpack.c.l.b16 %v1476
        %v1637 = vunpack.c.l.b16 %v1477
        %v1638 = vunpack.c.l.b16 %v1478
        %v1639 = vunpack.c.l.b16 %v1479
        %v1640 = vunpack.c.l.b16 %v1480
        %v1641 = vunpack.c.l.b16 %v1481
        %v1642 = vunpack.c.l.b16 %v1482
        %v1643 = vunpack.c.l.b16 %v1483
        %v1644 = vunpack.c.l.b16 %v1484
        %v1645 = vunpack.c.l.b16 %v1485
        %v1646 = vunpack.c.l.b16 %v1486
        %v1647 = vunpack.c.l.b16 %v1487
        %v1648 = vunpack.c.l.b16 %v1488
        %v1649 = vunpack.c.l.b16 %v1489
        %v1650 = vunpack.c.l.b16 %v1490
        %v1651 = vunpack.c.l.b16 %v1491
        %v1652 = vunpack.c.l.b16 %v1492
        %v1653 = vunpack.c.l.b16 %v1493
        %v1654 = vunpack.c.l.b16 %v1494
        %v1655 = vunpack.c.l.b16 %v1495
        %v1656 = vunpack.c.l.b16 %v1496
        %v1657 = vunpack.c.l.b16 %v1497
        %v1658 = vunpack.c.l.b16 %v1498
        %v1659 = vunpack.c.l.b16 %v1499
        %v1660 = vunpack.c.l.b16 %v1500
        %v1661 = vunpack.c.l.b16 %v1501
        %v1662 = vunpack.c.l.b16 %v1502
        %v1663 = vunpack.c.l.b16 %v1503
        %v1664 = vunpack.c.l.b16 %v1504
        %v1665 = vunpack.c.l.b16 %v1505
        %v1666 = vunpack.c.l.b16 %v1506
        %v1667 = vunpack.c.l.b16 %v1507
        %v1668 = vunpack.c.l.b16 %v1508
        %v1669 = vunpack.c.l.b16 %v1509
        %v1670 = vunpack.c.l.b16 %v1510
        %v1671 = vunpack.c.l.b16 %v1511
        %v1672 = vunpack.c.l.b16 %v1512
        %v1673 = vunpack.c.l.b16 %v1513
        %v1674 = vunpack.c.l.b16 %v1514
        %v1675 = vunpack.c.l.b16 %v1515
        %v1676 = vunpack.c.l.b16 %v1516
        %v1677 = vunpack.c.l.b16 %v1517
        %v1678 = vunpack.c.l.b16 %v1518
        %v1679 = vunpack.c.l.b16 %v1519
        %v1680 = vunpack.c.l.b16 %v1520
        %v1681 = vpack.c.b16 %v1634, %v1633
        %v1682 = vpack.c.b16 %v1636, %v1635
        %v1683 = vpack.c.b16 %v1638, %v1637
        %v1684 = vpack.c.b16 %v1640, %v1639
        %v1685 = vpack.c.b16 %v1642, %v1641
        %v1686 = vpack.c.b16 %v1644, %v1643
        %v1687 = vpack.c.b16 %v1646, %v1645
        %v1688 = vpack.c.b16 %v1648, %v1647
        %v1689 = vpack.c.b16 %v1650, %v1649
        %v1690 = vpack.c.b16 %v1652, %v1651
        %v1691 = vpack.c.b16 %v1654, %v1653
        %v1692 = vpack.c.b16 %v1656, %v1655
        %v1693 = vpack.c.b16 %v1658, %v1657
        %v1694 = vpack.c.b16 %v1660, %v1659
        %v1695 = vpack.c.b16 %v1662, %v1661
        %v1696 = vpack.c.b16 %v1664, %v1663
        %v1697 = vpack.c.b16 %v1666, %v1665
        %v1698 = vpack.c.b16 %v1668, %v1667
        %v1699 = vpack.c.b16 %v1670, %v1669
        %v1700 = vpack.c.b16 %v1672, %v1671
        %v1701 = vpack.c.b16 %v1674, %v1673
        %v1702 = vpack.c.b16 %v1676, %v1675
        %v1703 = vpack.c.b16 %v1678, %v1677
        %v1704 = vpack.c.b16 %v1680, %v1679
        %1729 = vmatprep.subr.bf16.mxu0 0
        %1730 = vmatpush1.bf16.msra.mxu0 %v1688
        %1731 = vmatprep.subr.bf16.mxu0 0
        %1732 = vmatpush1.bf16.msra.mxu0 %v1687
        %1733 = vmatprep.subr.bf16.mxu0 0
        %1734 = vmatpush1.bf16.msra.mxu0 %v1686
        %1735 = vmatprep.subr.bf16.mxu0 0
        %1736 = vmatpush1.bf16.msra.mxu0 %v1685
        %1737 = vmatprep.subr.bf16.mxu0 0
        %1738 = vmatpush1.bf16.msra.mxu0 %v1684
        %1739 = vmatprep.subr.bf16.mxu0 0
        %1740 = vmatpush1.bf16.msra.mxu0 %v1683
        %1741 = vmatprep.subr.bf16.mxu0 0
        %1742 = vmatpush1.bf16.msra.mxu0 %v1682
        %1743 = vmatprep.subr.bf16.mxu0 0
        %1744 = vmatpush1.bf16.msra.mxu0 %v1681
        %1745 = vmatprep.subr.bf16.mxu0 0
        %1746 = vmatpush2.bf16.msra.mxu0 %v1696
        %1747 = vmatprep.subr.bf16.mxu0 0
        %1748 = vmatpush2.bf16.msra.mxu0 %v1695
        %1749 = vmatprep.subr.bf16.mxu0 0
        %1750 = vmatpush2.bf16.msra.mxu0 %v1694
        %1751 = vmatprep.subr.bf16.mxu0 0
        %1752 = vmatpush2.bf16.msra.mxu0 %v1693
        %1753 = vmatprep.subr.bf16.mxu0 0
        %1754 = vmatpush2.bf16.msra.mxu0 %v1692
        %1755 = vmatprep.subr.bf16.mxu0 0
        %1756 = vmatpush2.bf16.msra.mxu0 %v1691
        %1757 = vmatprep.subr.bf16.mxu0 0
        %1758 = vmatpush2.bf16.msra.mxu0 %v1690
        %1759 = vmatprep.subr.bf16.mxu0 0
        %1760 = vmatpush2.bf16.msra.mxu0 %v1689
        %1761 = vmatprep.mubr.bf16.mxu0 %v1562
        %1762 = vmatmul.mubr.bf16.gmra.mxu0 %v1561
        %v1763 = vpop.f32.mrf.mxu0
        %v1764 = vadd.f32 0.0, %v1763
        %v1765 = vpop.f32.mrf.mxu0
        %v1766 = vpop.f32.mrf.mxu0
        %v1767 = vadd.f32 0.0, %v1766
        %v1768 = vpop.f32.mrf.mxu0
        %1769 = vmatprep.mubr.bf16.mxu0 %v1565
        %1770 = vmatmul.mubr.bf16.gmra.mxu0 %v1564
        %v1771 = vpop.f32.mrf.mxu0
        %v1772 = vadd.f32 0.0, %v1771
        %v1773 = vpop.f32.mrf.mxu0
        %v1774 = vpop.f32.mrf.mxu0
        %v1775 = vadd.f32 0.0, %v1774
        %v1776 = vpop.f32.mrf.mxu0
        %1777 = vmatprep.mubr.bf16.mxu0 %v1568
        %1778 = vmatmul.mubr.bf16.gmra.mxu0 %v1567
        %v1779 = vpop.f32.mrf.mxu0
        %v1780 = vadd.f32 0.0, %v1779
        %v1781 = vpop.f32.mrf.mxu0
        %v1782 = vpop.f32.mrf.mxu0
        %v1783 = vadd.f32 0.0, %v1782
        %v1784 = vpop.f32.mrf.mxu0
        %1785 = vmatprep.mubr.bf16.mxu0 %v1571
        %1786 = vmatmul.mubr.bf16.gmra.mxu0 %v1570
        %v1787 = vpop.f32.mrf.mxu0
        %v1788 = vadd.f32 0.0, %v1787
        %v1789 = vpop.f32.mrf.mxu0
        %v1790 = vpop.f32.mrf.mxu0
        %v1791 = vadd.f32 0.0, %v1790
        %v1792 = vpop.f32.mrf.mxu0
        %1793 = vdwg.mxu0
        %1794 = vmatprep.subr.bf16.mxu0 0
        %1795 = vmatpush1.bf16.msra.mxu0 %v1704
        %1796 = vmatprep.subr.bf16.mxu0 0
        %1797 = vmatpush1.bf16.msra.mxu0 %v1703
        %1798 = vmatprep.subr.bf16.mxu0 0
        %1799 = vmatpush1.bf16.msra.mxu0 %v1702
        %1800 = vmatprep.subr.bf16.mxu0 0
        %1801 = vmatpush1.bf16.msra.mxu0 %v1701
        %1802 = vmatprep.subr.bf16.mxu0 0
        %1803 = vmatpush1.bf16.msra.mxu0 %v1700
        %1804 = vmatprep.subr.bf16.mxu0 0
        %1805 = vmatpush1.bf16.msra.mxu0 %v1699
        %1806 = vmatprep.subr.bf16.mxu0 0
        %1807 = vmatpush1.bf16.msra.mxu0 %v1698
        %1808 = vmatprep.subr.bf16.mxu0 0
        %1809 = vmatpush1.bf16.msra.mxu0 %v1697
        %1810 = vmatprep.subr.bf16.mxu0 0
        %1811 = vmatpush2.bf16.msra.mxu0 0
        %1812 = vmatprep.subr.bf16.mxu0 0
        %1813 = vmatpush2.bf16.msra.mxu0 0
        %1814 = vmatprep.subr.bf16.mxu0 0
        %1815 = vmatpush2.bf16.msra.mxu0 0
        %1816 = vmatprep.subr.bf16.mxu0 0
        %1817 = vmatpush2.bf16.msra.mxu0 0
        %1818 = vmatprep.subr.bf16.mxu0 0
        %1819 = vmatpush2.bf16.msra.mxu0 0
        %1820 = vmatprep.subr.bf16.mxu0 0
        %1821 = vmatpush2.bf16.msra.mxu0 0
        %1822 = vmatprep.subr.bf16.mxu0 0
        %1823 = vmatpush2.bf16.msra.mxu0 0
        %1824 = vmatprep.subr.bf16.mxu0 0
        %1825 = vmatpush2.bf16.msra.mxu0 0
        %1826 = vmatprep.mubr.bf16.mxu0 0
        %1827 = vmatmul.mubr.bf16.gmra.mxu0 %v1563
        %v1828 = vpop.f32.mrf.mxu0
        %v1829 = vadd.f32 %v1764, %v1828
        %v1830 = vpop.f32.mrf.mxu0
        %v1831 = vpop.f32.mrf.mxu0
        %v1832 = vadd.f32 %v1767, %v1831
        %v1833 = vpop.f32.mrf.mxu0
        %1834 = vmatprep.mubr.bf16.mxu0 0
        %1835 = vmatmul.mubr.bf16.gmra.mxu0 %v1566
        %v1836 = vpop.f32.mrf.mxu0
        %v1837 = vadd.f32 %v1772, %v1836
        %v1838 = vpop.f32.mrf.mxu0
        %v1839 = vpop.f32.mrf.mxu0
        %v1840 = vadd.f32 %v1775, %v1839
        %v1841 = vpop.f32.mrf.mxu0
        %1842 = vmatprep.mubr.bf16.mxu0 0
        %1843 = vmatmul.mubr.bf16.gmra.mxu0 %v1569
        %v1844 = vpop.f32.mrf.mxu0
        %v1845 = vadd.f32 %v1780, %v1844
        %v1846 = vpop.f32.mrf.mxu0
        %v1847 = vpop.f32.mrf.mxu0
        %v1848 = vadd.f32 %v1783, %v1847
        %v1849 = vpop.f32.mrf.mxu0
        %1850 = vmatprep.mubr.bf16.mxu0 0
        %1851 = vmatmul.mubr.bf16.gmra.mxu0 %v1572
        %v1852 = vpop.f32.mrf.mxu0
        %v1853 = vadd.f32 %v1788, %v1852
        %v1854 = vpop.f32.mrf.mxu0
        %v1855 = vpop.f32.mrf.mxu0
        %v1856 = vadd.f32 %v1791, %v1855
        %v1857 = vpop.f32.mrf.mxu0
        %1858 = vdwg.mxu0
        %v1859 = vadd.f32 %v1425, %v1829
        %v1860 = vadd.f32 %v1428, %v1832
        %v1861 = vadd.f32 %v1433, %v1837
        %v1862 = vadd.f32 %v1436, %v1840
        %v1863 = vadd.f32 %v1441, %v1845
        %v1864 = vadd.f32 %v1444, %v1848
        %v1865 = vadd.f32 %v1449, %v1853
        %v1866 = vadd.f32 %v1452, %v1856
        %v1867 = vld [vmem:[%s5] sm:$0x1]
        %v1869 = vlaneseq
        %v1870 = vshrl.u32 %v1869, 7
        %v1871 = vsub.s32 0, %v1870
        %v1872 = vrot.slane %v1867, %v1871
        %v1874 = vadd.f32 %v1859, %v1872
        %v1875 = vadd.f32 %v1860, %v1872
        %v1876 = vadd.f32 %v1861, %v1872
        %v1877 = vadd.f32 %v1862, %v1872
        %v1878 = vadd.f32 %v1863, %v1872
        %v1879 = vadd.f32 %v1864, %v1872
        %v1880 = vadd.f32 %v1865, %v1872
        %v1881 = vadd.f32 %v1866, %v1872
        %v1882 = vmax.f32 %v1874, 0.0
        %v1883 = vmax.f32 %v1875, 0.0
        %v1884 = vmax.f32 %v1876, 0.0
        %v1885 = vmax.f32 %v1877, 0.0
        %v1886 = vmax.f32 %v1878, 0.0
        %v1887 = vmax.f32 %v1879, 0.0
        %v1888 = vmax.f32 %v1880, 0.0
        %v1889 = vmax.f32 %v1881, 0.0
        %v1890 = vpack.c.bf16 %v1883, %v1882
        %v1891 = vpack.c.bf16 %v1885, %v1884
        %v1892 = vpack.c.bf16 %v1887, %v1886
        %v1893 = vpack.c.bf16 %v1889, %v1888
        %v1894 = vld [vmem:[#allocation9] sm:$0xf]
        %v1895 = vld [vmem:[#allocation9 + $0x4] sm:$0xf]
        %v1896 = vld [vmem:[#allocation9 + $0x8] sm:$0xf]
        %v1897 = vld [vmem:[#allocation9 + $0xc] sm:$0xf]
        %v1898 = vld [vmem:[#allocation9 + $0x10] sm:$0xf]
        %v1899 = vld [vmem:[#allocation9 + $0x14] sm:$0xf]
        %v1900 = vld [vmem:[#allocation9 + $0x18] sm:$0xf]
        %v1901 = vld [vmem:[#allocation9 + $0x1c] sm:$0xf]
        %v1902 = vld [vmem:[#allocation9 + $0x20] sm:$0xf]
        %v1903 = vld [vmem:[#allocation9 + $0x24] sm:$0xf]
        %v1904 = vld [vmem:[#allocation9 + $0x28] sm:$0xf]
        %v1905 = vld [vmem:[#allocation9 + $0x2c] sm:$0xf]
        %v1906 = vld [vmem:[#allocation9 + $0x30] sm:$0xf]
        %v1907 = vld [vmem:[#allocation9 + $0x34] sm:$0xf]
        %v1908 = vld [vmem:[#allocation9 + $0x38] sm:$0xf]
        %v1909 = vld [vmem:[#allocation9 + $0x3c] sm:$0xf]
        %v1910 = vld [vmem:[%s6] sm:$0x1]
        %v1912 = vlaneseq
        %v1913 = vshrl.u32 %v1912, 7
        %v1914 = vsub.s32 0, %v1913
        %v1915 = vrot.slane %v1910, %v1914
        %v1933 = vunpack.c.l.b16 %v1894
        %v1934 = vunpack.c.l.b16 %v1895
        %v1935 = vunpack.c.l.b16 %v1896
        %v1936 = vunpack.c.l.b16 %v1897
        %v1937 = vunpack.c.l.b16 %v1898
        %v1938 = vunpack.c.l.b16 %v1899
        %v1939 = vunpack.c.l.b16 %v1900
        %v1940 = vunpack.c.l.b16 %v1901
        %v1941 = vunpack.c.l.b16 %v1902
        %v1942 = vunpack.c.l.b16 %v1903
        %v1943 = vunpack.c.l.b16 %v1904
        %v1944 = vunpack.c.l.b16 %v1905
        %v1945 = vunpack.c.l.b16 %v1906
        %v1946 = vunpack.c.l.b16 %v1907
        %v1947 = vunpack.c.l.b16 %v1908
        %v1948 = vunpack.c.l.b16 %v1909
        %v1949 = vpack.c.b16 %v1934, %v1933
        %v1950 = vpack.c.b16 %v1936, %v1935
        %v1951 = vpack.c.b16 %v1938, %v1937
        %v1952 = vpack.c.b16 %v1940, %v1939
        %v1953 = vpack.c.b16 %v1942, %v1941
        %v1954 = vpack.c.b16 %v1944, %v1943
        %v1955 = vpack.c.b16 %v1946, %v1945
        %v1956 = vpack.c.b16 %v1948, %v1947
        %1965 = vmatprep.subr.bf16.mxu0 0
        %1966 = vmatpush1.bf16.msra.mxu0 %v1956
        %1967 = vmatprep.subr.bf16.mxu0 0
        %1968 = vmatpush1.bf16.msra.mxu0 %v1955
        %1969 = vmatprep.subr.bf16.mxu0 0
        %1970 = vmatpush1.bf16.msra.mxu0 %v1954
        %1971 = vmatprep.subr.bf16.mxu0 0
        %1972 = vmatpush1.bf16.msra.mxu0 %v1953
        %1973 = vmatprep.subr.bf16.mxu0 0
        %1974 = vmatpush1.bf16.msra.mxu0 %v1952
        %1975 = vmatprep.subr.bf16.mxu0 0
        %1976 = vmatpush1.bf16.msra.mxu0 %v1951
        %1977 = vmatprep.subr.bf16.mxu0 0
        %1978 = vmatpush1.bf16.msra.mxu0 %v1950
        %1979 = vmatprep.subr.bf16.mxu0 0
        %1980 = vmatpush1.bf16.msra.mxu0 %v1949
        %1981 = vmatprep.subr.bf16.mxu0 0
        %1982 = vmatpush2.bf16.msra.mxu0 0
        %1983 = vmatprep.subr.bf16.mxu0 0
        %1984 = vmatpush2.bf16.msra.mxu0 0
        %1985 = vmatprep.subr.bf16.mxu0 0
        %1986 = vmatpush2.bf16.msra.mxu0 0
        %1987 = vmatprep.subr.bf16.mxu0 0
        %1988 = vmatpush2.bf16.msra.mxu0 0
        %1989 = vmatprep.subr.bf16.mxu0 0
        %1990 = vmatpush2.bf16.msra.mxu0 0
        %1991 = vmatprep.subr.bf16.mxu0 0
        %1992 = vmatpush2.bf16.msra.mxu0 0
        %1993 = vmatprep.subr.bf16.mxu0 0
        %1994 = vmatpush2.bf16.msra.mxu0 0
        %1995 = vmatprep.subr.bf16.mxu0 0
        %1996 = vmatpush2.bf16.msra.mxu0 0
        %1997 = vmatprep.mubr.bf16.mxu0 0
        %1998 = vmatmul.mubr.bf16.gmra.mxu0 %v1890
        %v1999 = vpop.f32.mrf.mxu0
        %v2000 = vadd.f32 %v1915, %v1999
        %v2001 = vpop.f32.mrf.mxu0
        %v2002 = vpop.f32.mrf.mxu0
        %v2003 = vadd.f32 %v1915, %v2002
        %v2004 = vpop.f32.mrf.mxu0
        %2005 = vmatprep.mubr.bf16.mxu0 0
        %2006 = vmatmul.mubr.bf16.gmra.mxu0 %v1891
        %v2007 = vpop.f32.mrf.mxu0
        %v2008 = vadd.f32 %v1915, %v2007
        %v2009 = vpop.f32.mrf.mxu0
        %v2010 = vpop.f32.mrf.mxu0
        %v2011 = vadd.f32 %v1915, %v2010
        %v2012 = vpop.f32.mrf.mxu0
        %2013 = vmatprep.mubr.bf16.mxu0 0
        %2014 = vmatmul.mubr.bf16.gmra.mxu0 %v1892
        %v2015 = vpop.f32.mrf.mxu0
        %v2016 = vadd.f32 %v1915, %v2015
        %v2017 = vpop.f32.mrf.mxu0
        %v2018 = vpop.f32.mrf.mxu0
        %v2019 = vadd.f32 %v1915, %v2018
        %v2020 = vpop.f32.mrf.mxu0
        %2021 = vmatprep.mubr.bf16.mxu0 0
        %2022 = vmatmul.mubr.bf16.gmra.mxu0 %v1893
        %v2023 = vpop.f32.mrf.mxu0
        %v2024 = vadd.f32 %v1915, %v2023
        %v2025 = vpop.f32.mrf.mxu0
        %v2026 = vpop.f32.mrf.mxu0
        %v2027 = vadd.f32 %v1915, %v2026
        %v2028 = vpop.f32.mrf.mxu0
        %2029 = vdwg.mxu0
        %v2030 = vunpack.c.l.bf16 %v342
        %v2031 = vunpack.c.l.bf16 %v343
        %v2032 = vunpack.c.l.bf16 %v344
        %v2033 = vunpack.c.l.bf16 %v345
        %v2034 = vunpack.c.l.bf16 %v346
        %v2035 = vunpack.c.l.bf16 %v347
        %v2036 = vunpack.c.l.bf16 %v348
        %v2037 = vunpack.c.l.bf16 %v349
        %v2038 = vadd.f32 %v2000, %v2030
        %v2039 = vadd.f32 %v2003, %v2031
        %v2040 = vadd.f32 %v2008, %v2032
        %v2041 = vadd.f32 %v2011, %v2033
        %v2042 = vadd.f32 %v2016, %v2034
        %v2043 = vadd.f32 %v2019, %v2035
        %v2044 = vadd.f32 %v2024, %v2036
        %v2045 = vadd.f32 %v2027, %v2037
        %v2046 = vmax.f32 %v2038, 0.0
        %v2047 = vmax.f32 %v2039, 0.0
        %v2048 = vmax.f32 %v2040, 0.0
        %v2049 = vmax.f32 %v2041, 0.0
        %v2050 = vmax.f32 %v2042, 0.0
        %v2051 = vmax.f32 %v2043, 0.0
        %v2052 = vmax.f32 %v2044, 0.0
        %v2053 = vmax.f32 %v2045, 0.0
        %2054 = vst [vmem:[%s340] sm:$0xff] %v2046
        %2055 = vst [vmem:[%s340 + $0x8] sm:$0xff] %v2047
        %2056 = vst [vmem:[%s340 + $0x10] sm:$0xff] %v2048
        %2057 = vst [vmem:[%s340 + $0x18] sm:$0xff] %v2049
        %2058 = vst [vmem:[%s340 + $0x20] sm:$0xff] %v2050
        %2059 = vst [vmem:[%s340 + $0x28] sm:$0xff] %v2051
        %2060 = vst [vmem:[%s340 + $0x30] sm:$0xff] %v2052
        %2061 = vst [vmem:[%s340 + $0x38] sm:$0xff] %v2053
        %s2062 = sand.u32 %s186, 1
        %s2063 = scalar_lea.sflag [#allocation5], %s2062
        %s2064 = sand.u32 %s186, 1
        %s2065 = smul.addr %s2064, 64
        %s2066 = scalar_lea.vmem [#allocation11], %s2065
        // Predicated region
        $region65: #{tpu_custom_call.1} parent=47 // pred_check
          %p2067 = pneg %p196
        $region66: #{tpu_custom_call.1} parent=47 // pred_check_branch
          %2069 = sbr.rel (%p2067) target = $region68
        $region67: #{tpu_custom_call.1} parent=47 // pred_region
          %s2071 = ssub.s32 1024, 1024
          %2072 = vsyncadd %s2063, %s2071
          %s2073 = smul.addr %s26, 8
          %s2074 = smul.addr %s2073, 128
          %s2075 = scalar_lea.hbm %s7, %s2074
          %s2076 = sshll.u32 %s2066, 4
          %s2077 = int_to_ptr.vmem [resolvable:$true] %s2076
          %2082 = dma.vmem_to_hbm [thread:$0]  %s2077, 1024, %s2075, %s2063, 128, 128, 8
        $region68: #{tpu_custom_call.1} parent=47 // pred_fallthru
          _
      $region48: #{tpu_custom_call.1} parent=5 // pred_fallthru
        _
      %p2083 = scmp.le.s32.totalorder 2, %s21
      // Predicated region
      $region69: #{tpu_custom_call.1} parent=5 // pred_check
        %p2084 = pneg %p2083
      $region70: #{tpu_custom_call.1} parent=5 // pred_check_branch
        %2086 = sbr.rel (%p2084) target = $region72
      $region71: #{tpu_custom_call.1} parent=5 // pred_region
        %s2087 = ssub.s32 %s21, 2
        // Predicated region
        $region73: #{tpu_custom_call.1} parent=71 // pred_check
          %p2088 = pneg %p202
        $region74: #{tpu_custom_call.1} parent=71 // pred_check_branch
          %2090 = sbr.rel (%p2088) target = $region76
        $region75: #{tpu_custom_call.1} parent=71 // pred_region
          %s2091 = sand.u32 %s187, 1
          %s2092 = scalar_lea.sflag [#allocation5], %s2091
          %s2093 = sand.u32 %s187, 1
          %s2094 = smul.addr %s2093, 64
          %s2095 = scalar_lea.vmem [#allocation11], %s2094
          %2096 = dma.done %s2092, 1024
        $region76: #{tpu_custom_call.1} parent=71 // pred_fallthru
          _
      $region72: #{tpu_custom_call.1} parent=5 // pred_fallthru
        _
    $region6: #{tpu_custom_call.1} parent=1 // loop_footer
      %s25 = sadd.s32 1, %s21
    $region7: #{tpu_custom_call.1} parent=1 // loop_footer_branch
      %20 = sbr.rel target = $region3
    $region8: #{tpu_custom_call.1} parent=1 // loop_exit
      _
    %2097 = vsyncpa [#allocation4], 1
    %s2098 = scalar_lea.sflag [#allocation4], 1
    %2099 = vsyncpa %s2098, 1
    %2100 = vsyncpa [#allocation7], 1
    %2101 = vsyncpa [#allocation10], 1
    %2102 = vsyncpa [#allocation5], 1
    %s2103 = scalar_lea.sflag [#allocation5], 1
    %2104 = vsyncpa %s2103, 1

</llo_original>
